<compile_context>
chip_gen: v7x
topology: tpu7x:2x2x1
jax: 0.10.0
libtpu: 0.0.40
codegen_flags: <defaults>
</compile_context>

<pallas_src>
import jax
import jax.numpy as jnp
from jax import lax
from jax.experimental import pallas as pl
from jax.experimental.pallas import tpu as pltpu


def _relu6(x):
    return jnp.minimum(jnp.maximum(x, 0.0), 6.0)


# ------------------------------- kernel --------------------------------------

def _make_ir_kernel(*, expand, identity, W, L):
    """Fused InvertedResidual body (stride-1 resolution field).

    Ref order: x, [w1, b1], coef, dwb, w2, b2, out
      x    (1, Cin, L)   act dtype     coef (9, hidden, L) f32 (tap x edge mask)
      w1   (hidden, Cin) act dtype     dwb  (hidden, 1)    f32
      w2   (oup, hidden) act dtype     b1/b2 (*, 1)        f32
      out  (1, oup, L)   f32           L = nb * H * W (batch folded on lanes)
    """

    def kernel(*refs):
        i = 0
        x_ref = refs[i]; i += 1
        if expand:
            w1_ref, b1_ref = refs[i], refs[i + 1]; i += 2
        coef_ref = refs[i]; i += 1
        dwb_ref = refs[i]; i += 1
        w2_ref, b2_ref = refs[i], refs[i + 1]; i += 2
        o_ref = refs[i]

        xb = x_ref[0]                                   # (Cin, L)

        if expand:
            # 1x1 expand: MXU matmul, flattened batch*spatial on the lane axis.
            h = jnp.dot(w1_ref[...], xb, preferred_element_type=jnp.float32)
            h = _relu6(h + b1_ref[...])                 # (hidden, L) f32
        else:
            h = xb.astype(jnp.float32)                  # f32 VPU math (v5e)

        # 3x3 depthwise, stride-1 field: centre tap + 8 lane rolls (XLU) with
        # pre-combined (tap weight x zero-padding mask) coefficients (VPU).
        # Wrap-around of the roll (row edges, image boundaries, slab ends) is
        # exactly where coef is zero, so it reproduces zero padding.
        acc = h * coef_ref[4]                           # centre tap init
        for t in (0, 1, 2, 3, 5, 6, 7, 8):
            dy, dx = t // 3 - 1, t % 3 - 1
            shift = (-(dy * W + dx)) % L
            acc = acc + pltpu.roll(h, shift=shift, axis=1) * coef_ref[t]
        d = _relu6(acc + dwb_ref[...])                  # (hidden, L) f32

        # 1x1 project (full resolution; stride-2 subsample happens outside).
        y = jnp.dot(w2_ref[...], d.astype(w2_ref.dtype),
                    preferred_element_type=jnp.float32) + b2_ref[...]
        if identity:
            y = y + xb.astype(jnp.float32)
        o_ref[0] = y.astype(o_ref.dtype)

    return kernel


# ------------------------------- wrapper --------------------------------------

def inverted_residual(x, params, *, stride, expand_ratio,
                      act_dtype=jnp.float32, images_per_step=1):
    """Pallas InvertedResidual.forward.

    x      : (N, Cin, H, W) f32, PyTorch NCHW (no transposes, lane-dense I/O).
    params : w1 (hidden, Cin), b1 (hidden,)      [only if expand_ratio != 1]
             dw (hidden, 9) row-major 3x3 taps, dwb (hidden,)
             w2 (oup, hidden), b2 (oup,)
    act_dtype : wire / MXU-operand dtype (bf16 on v6e/v7x); math & output stay
                f32.
    images_per_step : images folded onto the lane axis per grid step.
    """
    assert stride in (1, 2)
    N, Cin, H, W = x.shape
    oup, hidden = params["w2"].shape
    expand = expand_ratio != 1
    if expand:
        assert hidden == int(round(Cin * expand_ratio))
    else:
        assert hidden == Cin
    identity = (stride == 1) and (Cin == oup)

    HW = H * W
    nb = int(images_per_step) if images_per_step else 1
    assert N % nb == 0
    steps = N // nb
    L = nb * HW

    # NCHW -> (steps, Cin, nb*H*W): batch folded onto the lane axis.
    xr = x.reshape(N, Cin, HW)
    if nb > 1:
        xr = xr.reshape(steps, nb, Cin, HW).transpose(0, 2, 1, 3)
    xr = xr.reshape(steps, Cin, L).astype(act_dtype)

    # Zero-padding edge masks combined with the depthwise taps, off-kernel.
    pos = jnp.arange(HW, dtype=jnp.int32)
    hi, wi = pos // W, pos % W
    masks = jnp.stack([
        ((hi + dy >= 0) & (hi + dy < H) & (wi + dx >= 0) & (wi + dx < W))
        for dy in (-1, 0, 1) for dx in (-1, 0, 1)
    ]).astype(jnp.float32)                                     # (9, HW)
    if nb > 1:
        masks = jnp.tile(masks, (1, nb))                       # (9, L)
    coef = params["dw"].astype(jnp.float32).T[:, :, None] * masks[:, None, :]
    # coef: (9, hidden, L) — loaded once (constant index map, single-buffered).

    const_args = []
    if expand:
        const_args += [params["w1"].astype(act_dtype),
                       params["b1"].reshape(hidden, 1).astype(jnp.float32)]
    const_args += [coef,
                   params["dwb"].reshape(hidden, 1).astype(jnp.float32),
                   params["w2"].astype(act_dtype),
                   params["b2"].reshape(oup, 1).astype(jnp.float32)]

    kernel = _make_ir_kernel(expand=expand, identity=identity, W=W, L=L)

    def _run(single_buffer_consts):
        def const_spec(shape):
            idx = lambda n, _rank=len(shape): (0,) * _rank
            if single_buffer_consts and hasattr(pl, "Buffered"):
                return pl.BlockSpec(shape, idx, pipeline_mode=pl.Buffered(1))
            return pl.BlockSpec(shape, idx)

        in_specs = [pl.BlockSpec((1, Cin, L), lambda n: (n, 0, 0))]
        in_specs += [const_spec(a.shape) for a in const_args]

        return pl.pallas_call(
            kernel,
            out_shape=jax.ShapeDtypeStruct((steps, oup, L), jnp.float32),
            grid=(steps,),
            in_specs=in_specs,
            out_specs=pl.BlockSpec((1, oup, L), lambda n: (n, 0, 0)),
            compiler_params=pltpu.CompilerParams(
                dimension_semantics=("parallel",)),
        )(xr, *const_args)

    try:
        out = _run(True)        # single-buffered constant operands
    except Exception:           # JAX without BlockSpec.pipeline_mode / Buffered(1)
        out = _run(False)

    # Un-fold the batch, restore NCHW; stride-2 subsample in plain XLA.
    if nb > 1:
        out = out.reshape(steps, oup, nb, H, W).transpose(0, 2, 1, 3, 4)
    y = out.reshape(N, oup, H, W)
    if stride == 2:
        y = y[:, :, ::2, ::2]
    return y


# --------------------------- plain-JAX reference ------------------------------

def _ref_inverted_residual(x, params, *, stride, expand_ratio):
    dn = ("NCHW", "OIHW", "NCHW")
    N, Cin, H, W = x.shape
    oup, hidden = params["w2"].shape
    identity = (stride == 1) and (Cin == oup)
    y = x
    if expand_ratio != 1:
        w1 = params["w1"][:, :, None, None]
        y = lax.conv_general_dilated(y, w1, (1, 1), "VALID", dimension_numbers=dn)
        y = jnp.clip(y + params["b1"].reshape(1, -1, 1, 1), 0.0, 6.0)
    dw = params["dw"].reshape(hidden, 1, 3, 3)
    y = lax.conv_general_dilated(y, dw, (stride, stride), ((1, 1), (1, 1)),
                                 dimension_numbers=dn, feature_group_count=hidden)
    y = jnp.clip(y + params["dwb"].reshape(1, -1, 1, 1), 0.0, 6.0)
    w2 = params["w2"][:, :, None, None]
    y = lax.conv_general_dilated(y, w2, (1, 1), "VALID", dimension_numbers=dn)
    y = y + params["b2"].reshape(1, -1, 1, 1)
    if identity:
        y = y + x
    return y


# --------------------------------- main ---------------------------------------

if __name__ == "__main__":
    key = jax.random.PRNGKey(0)
    N, H, W = 8, 16, 16

    def make_params(key, Cin, oup, expand_ratio):
        hidden = Cin if expand_ratio == 1 else int(round(Cin * expand_ratio))
        ks = jax.random.split(key, 6)
        p = dict(
            dw=0.1 * jax.random.normal(ks[2], (hidden, 9), jnp.float32),
            dwb=0.1 * jax.random.normal(ks[3], (hidden,), jnp.float32),
            w2=0.1 * jax.random.normal(ks[4], (oup, hidden), jnp.float32),
            b2=0.1 * jax.random.normal(ks[5], (oup,), jnp.float32),
        )
        if expand_ratio != 1:
            p["w1"] = 0.1 * jax.random.normal(ks[0], (hidden, Cin), jnp.float32)
            p["b1"] = 0.1 * jax.random.normal(ks[1], (hidden,), jnp.float32)
        return p

    k1, k2, k3, k4, k5, k6 = jax.random.split(key, 6)

    # Case 1: expand_ratio=6, stride=1, inp=oup=8 -> identity residual, f32.
    x1 = jax.random.normal(k1, (N, 8, H, W), jnp.float32)
    p1 = make_params(k2, 8, 8, 6)
    y1 = inverted_residual(x1, p1, stride=1, expand_ratio=6)
    jax.block_until_ready(y1)
    r1 = _ref_inverted_residual(x1, p1, stride=1, expand_ratio=6)
    assert y1.shape == (N, 8, H, W)
    assert jnp.allclose(y1, r1, atol=1e-3, rtol=1e-3), "case1 expand/stride1 mismatch"

    # Case 2: expand_ratio=1, stride=1, inp=oup=16 -> identity residual, f32.
    x2 = jax.random.normal(k3, (N, 16, H, W), jnp.float32)
    p2 = make_params(k4, 16, 16, 1)
    y2 = inverted_residual(x2, p2, stride=1, expand_ratio=1)
    jax.block_until_ready(y2)
    r2 = _ref_inverted_residual(x2, p2, stride=1, expand_ratio=1)
    assert jnp.allclose(y2, r2, atol=1e-3, rtol=1e-3), "case2 no-expand mismatch"

    # Case 3: expand_ratio=6, stride=2, inp=8 -> oup=16 (no identity), f32.
    x3 = jax.random.normal(k5, (N, 8, H, W), jnp.float32)
    p3 = make_params(k6, 8, 16, 6)
    y3 = inverted_residual(x3, p3, stride=2, expand_ratio=6)
    jax.block_until_ready(y3)
    r3 = _ref_inverted_residual(x3, p3, stride=2, expand_ratio=6)
    assert y3.shape == (N, 16, H // 2, W // 2)
    assert jnp.allclose(y3, r3, atol=1e-3, rtol=1e-3), "case3 stride2 mismatch"

    # Case 4: bf16 on the wire (MXU operands); math/output stay f32.
    y4 = inverted_residual(x1, p1, stride=1, expand_ratio=6, act_dtype=jnp.bfloat16)
    jax.block_until_ready(y4)
    assert jnp.allclose(y4, r1, atol=0.05, rtol=0.1), "case4 bf16 mismatch"

    # Case 5: images_per_step=2 -> two images folded onto the lane axis.
    y5 = inverted_residual(x1, p1, stride=1, expand_ratio=6, images_per_step=2)
    jax.block_until_ready(y5)
    assert jnp.allclose(y5, r1, atol=1e-3, rtol=1e-3), "case5 folded-batch mismatch"

    print("KERNEL_OK")
</pallas_src>

<mosaic_0001>
module attributes {stable_mosaic.version = 11 : i64} {
  func.func @kernel(%arg0: i32, %arg1: memref<1x8x256xf32, #tpu.memory_space<vmem>>, %arg2: memref<48x8xf32, #tpu.memory_space<vmem>>, %arg3: memref<48x1xf32, #tpu.memory_space<vmem>>, %arg4: memref<9x48x256xf32, #tpu.memory_space<vmem>>, %arg5: memref<48x1xf32, #tpu.memory_space<vmem>>, %arg6: memref<8x48xf32, #tpu.memory_space<vmem>>, %arg7: memref<8x1xf32, #tpu.memory_space<vmem>>, %arg8: memref<1x8x256xf32, #tpu.memory_space<vmem>>) attributes {dimension_semantics = [#tpu.dimension_semantics<parallel>], iteration_bounds = array<i64: 8>, scalar_prefetch = 0 : i64, scratch_operands = 0 : i64, tpu.core_type = #tpu.core_type<tc>, window_params = [{transform_indices = @transform_0, window_bounds = array<i64: 1, 8, 256>}, {pipeline_mode = #tpu.pipeline_mode<synchronous>, transform_indices = @transform_1, window_bounds = array<i64: 48, 8>}, {pipeline_mode = #tpu.pipeline_mode<synchronous>, transform_indices = @transform_2, window_bounds = array<i64: 48, 1>}, {pipeline_mode = #tpu.pipeline_mode<synchronous>, transform_indices = @transform_3, window_bounds = array<i64: 9, 48, 256>}, {pipeline_mode = #tpu.pipeline_mode<synchronous>, transform_indices = @transform_4, window_bounds = array<i64: 48, 1>}, {pipeline_mode = #tpu.pipeline_mode<synchronous>, transform_indices = @transform_5, window_bounds = array<i64: 8, 48>}, {pipeline_mode = #tpu.pipeline_mode<synchronous>, transform_indices = @transform_6, window_bounds = array<i64: 8, 1>}, {transform_indices = @transform_7, window_bounds = array<i64: 1, 8, 256>}]} {
    %c0 = arith.constant 0 : index
    %c0_0 = arith.constant 0 : index
    %c0_1 = arith.constant 0 : index
    %0 = vector.load %arg1[%c0, %c0_0, %c0_1] : memref<1x8x256xf32, #tpu.memory_space<vmem>>, vector<1x8x256xf32>
    %1 = vector.shape_cast %0 : vector<1x8x256xf32> to vector<8x256xf32>
    %c0_2 = arith.constant 0 : index
    %c0_3 = arith.constant 0 : index
    %2 = vector.load %arg2[%c0_2, %c0_3] : memref<48x8xf32, #tpu.memory_space<vmem>>, vector<48x8xf32>
    %cst = arith.constant dense<0.000000e+00> : vector<48x256xf32>
    %3 = tpu.matmul %2, %1, %cst {dimension_numbers = #tpu.dot_dimension_numbers<[1], [0], [0], [1], [0, 0, 1, 1], [], []>} : vector<48x8xf32>, vector<8x256xf32>, vector<48x256xf32> -> vector<48x256xf32>
    %c0_4 = arith.constant 0 : index
    %c0_5 = arith.constant 0 : index
    %4 = vector.load %arg3[%c0_4, %c0_5] : memref<48x1xf32, #tpu.memory_space<vmem>>, vector<48x1xf32>
    %5 = vector.broadcast %4 : vector<48x1xf32> to vector<48x256xf32>
    %6 = arith.addf %3, %5 : vector<48x256xf32>
    %cst_6 = arith.constant 0.000000e+00 : f32
    %7 = vector.broadcast %cst_6 : f32 to vector<48x256xf32>
    %8 = arith.maximumf %6, %7 : vector<48x256xf32>
    %cst_7 = arith.constant 6.000000e+00 : f32
    %9 = vector.broadcast %cst_7 : f32 to vector<48x256xf32>
    %10 = arith.minimumf %8, %9 : vector<48x256xf32>
    %c4 = arith.constant 4 : index
    %c0_8 = arith.constant 0 : index
    %c0_9 = arith.constant 0 : index
    %11 = vector.load %arg4[%c4, %c0_8, %c0_9] : memref<9x48x256xf32, #tpu.memory_space<vmem>>, vector<1x48x256xf32>
    %12 = vector.shape_cast %11 : vector<1x48x256xf32> to vector<48x256xf32>
    %13 = arith.mulf %10, %12 : vector<48x256xf32>
    %c17_i32 = arith.constant 17 : i32
    %14 = tpu.dynamic_rotate %10 by %c17_i32 dim 1 : vector<48x256xf32>, i32 -> vector<48x256xf32>
    %c0_10 = arith.constant 0 : index
    %c0_11 = arith.constant 0 : index
    %c0_12 = arith.constant 0 : index
    %15 = vector.load %arg4[%c0_10, %c0_11, %c0_12] : memref<9x48x256xf32, #tpu.memory_space<vmem>>, vector<1x48x256xf32>
    %16 = vector.shape_cast %15 : vector<1x48x256xf32> to vector<48x256xf32>
    %17 = arith.mulf %14, %16 : vector<48x256xf32>
    %18 = arith.addf %13, %17 : vector<48x256xf32>
    %c16_i32 = arith.constant 16 : i32
    %19 = tpu.dynamic_rotate %10 by %c16_i32 dim 1 : vector<48x256xf32>, i32 -> vector<48x256xf32>
    %c1 = arith.constant 1 : index
    %c0_13 = arith.constant 0 : index
    %c0_14 = arith.constant 0 : index
    %20 = vector.load %arg4[%c1, %c0_13, %c0_14] : memref<9x48x256xf32, #tpu.memory_space<vmem>>, vector<1x48x256xf32>
    %21 = vector.shape_cast %20 : vector<1x48x256xf32> to vector<48x256xf32>
    %22 = arith.mulf %19, %21 : vector<48x256xf32>
    %23 = arith.addf %18, %22 : vector<48x256xf32>
    %c15_i32 = arith.constant 15 : i32
    %24 = tpu.dynamic_rotate %10 by %c15_i32 dim 1 : vector<48x256xf32>, i32 -> vector<48x256xf32>
    %c2 = arith.constant 2 : index
    %c0_15 = arith.constant 0 : index
    %c0_16 = arith.constant 0 : index
    %25 = vector.load %arg4[%c2, %c0_15, %c0_16] : memref<9x48x256xf32, #tpu.memory_space<vmem>>, vector<1x48x256xf32>
    %26 = vector.shape_cast %25 : vector<1x48x256xf32> to vector<48x256xf32>
    %27 = arith.mulf %24, %26 : vector<48x256xf32>
    %28 = arith.addf %23, %27 : vector<48x256xf32>
    %c1_i32 = arith.constant 1 : i32
    %29 = tpu.dynamic_rotate %10 by %c1_i32 dim 1 : vector<48x256xf32>, i32 -> vector<48x256xf32>
    %c3 = arith.constant 3 : index
    %c0_17 = arith.constant 0 : index
    %c0_18 = arith.constant 0 : index
    %30 = vector.load %arg4[%c3, %c0_17, %c0_18] : memref<9x48x256xf32, #tpu.memory_space<vmem>>, vector<1x48x256xf32>
    %31 = vector.shape_cast %30 : vector<1x48x256xf32> to vector<48x256xf32>
    %32 = arith.mulf %29, %31 : vector<48x256xf32>
    %33 = arith.addf %28, %32 : vector<48x256xf32>
    %c255_i32 = arith.constant 255 : i32
    %34 = tpu.dynamic_rotate %10 by %c255_i32 dim 1 : vector<48x256xf32>, i32 -> vector<48x256xf32>
    %c5 = arith.constant 5 : index
    %c0_19 = arith.constant 0 : index
    %c0_20 = arith.constant 0 : index
    %35 = vector.load %arg4[%c5, %c0_19, %c0_20] : memref<9x48x256xf32, #tpu.memory_space<vmem>>, vector<1x48x256xf32>
    %36 = vector.shape_cast %35 : vector<1x48x256xf32> to vector<48x256xf32>
    %37 = arith.mulf %34, %36 : vector<48x256xf32>
    %38 = arith.addf %33, %37 : vector<48x256xf32>
    %c241_i32 = arith.constant 241 : i32
    %39 = tpu.dynamic_rotate %10 by %c241_i32 dim 1 : vector<48x256xf32>, i32 -> vector<48x256xf32>
    %c6 = arith.constant 6 : index
    %c0_21 = arith.constant 0 : index
    %c0_22 = arith.constant 0 : index
    %40 = vector.load %arg4[%c6, %c0_21, %c0_22] : memref<9x48x256xf32, #tpu.memory_space<vmem>>, vector<1x48x256xf32>
    %41 = vector.shape_cast %40 : vector<1x48x256xf32> to vector<48x256xf32>
    %42 = arith.mulf %39, %41 : vector<48x256xf32>
    %43 = arith.addf %38, %42 : vector<48x256xf32>
    %c240_i32 = arith.constant 240 : i32
    %44 = tpu.dynamic_rotate %10 by %c240_i32 dim 1 : vector<48x256xf32>, i32 -> vector<48x256xf32>
    %c7 = arith.constant 7 : index
    %c0_23 = arith.constant 0 : index
    %c0_24 = arith.constant 0 : index
    %45 = vector.load %arg4[%c7, %c0_23, %c0_24] : memref<9x48x256xf32, #tpu.memory_space<vmem>>, vector<1x48x256xf32>
    %46 = vector.shape_cast %45 : vector<1x48x256xf32> to vector<48x256xf32>
    %47 = arith.mulf %44, %46 : vector<48x256xf32>
    %48 = arith.addf %43, %47 : vector<48x256xf32>
    %c239_i32 = arith.constant 239 : i32
    %49 = tpu.dynamic_rotate %10 by %c239_i32 dim 1 : vector<48x256xf32>, i32 -> vector<48x256xf32>
    %c8 = arith.constant 8 : index
    %c0_25 = arith.constant 0 : index
    %c0_26 = arith.constant 0 : index
    %50 = vector.load %arg4[%c8, %c0_25, %c0_26] : memref<9x48x256xf32, #tpu.memory_space<vmem>>, vector<1x48x256xf32>
    %51 = vector.shape_cast %50 : vector<1x48x256xf32> to vector<48x256xf32>
    %52 = arith.mulf %49, %51 : vector<48x256xf32>
    %53 = arith.addf %48, %52 : vector<48x256xf32>
    %c0_27 = arith.constant 0 : index
    %c0_28 = arith.constant 0 : index
    %54 = vector.load %arg5[%c0_27, %c0_28] : memref<48x1xf32, #tpu.memory_space<vmem>>, vector<48x1xf32>
    %55 = vector.broadcast %54 : vector<48x1xf32> to vector<48x256xf32>
    %56 = arith.addf %53, %55 : vector<48x256xf32>
    %cst_29 = arith.constant 0.000000e+00 : f32
    %57 = vector.broadcast %cst_29 : f32 to vector<48x256xf32>
    %58 = arith.maximumf %56, %57 : vector<48x256xf32>
    %cst_30 = arith.constant 6.000000e+00 : f32
    %59 = vector.broadcast %cst_30 : f32 to vector<48x256xf32>
    %60 = arith.minimumf %58, %59 : vector<48x256xf32>
    %c0_31 = arith.constant 0 : index
    %c0_32 = arith.constant 0 : index
    %61 = vector.load %arg6[%c0_31, %c0_32] : memref<8x48xf32, #tpu.memory_space<vmem>>, vector<8x48xf32>
    %cst_33 = arith.constant dense<0.000000e+00> : vector<8x256xf32>
    %62 = tpu.matmul %61, %60, %cst_33 {dimension_numbers = #tpu.dot_dimension_numbers<[1], [0], [0], [1], [0, 0, 1, 1], [], []>} : vector<8x48xf32>, vector<48x256xf32>, vector<8x256xf32> -> vector<8x256xf32>
    %c0_34 = arith.constant 0 : index
    %c0_35 = arith.constant 0 : index
    %63 = vector.load %arg7[%c0_34, %c0_35] : memref<8x1xf32, #tpu.memory_space<vmem>>, vector<8x1xf32>
    %64 = vector.broadcast %63 : vector<8x1xf32> to vector<8x256xf32>
    %65 = arith.addf %62, %64 : vector<8x256xf32>
    %66 = arith.addf %65, %1 : vector<8x256xf32>
    %c0_36 = arith.constant 0 : index
    %c0_37 = arith.constant 0 : index
    %c0_38 = arith.constant 0 : index
    %67 = vector.load %arg8[%c0_36, %c0_37, %c0_38] : memref<1x8x256xf32, #tpu.memory_space<vmem>>, vector<1x8x256xf32>
    %68 = vector.shape_cast %67 : vector<1x8x256xf32> to vector<8x256xf32>
    %69 = vector.shape_cast %66 : vector<8x256xf32> to vector<1x8x256xf32>
    tpu.vector_store %arg8[%c0_36, %c0_37, %c0_38], %69 {strides = array<i32>} : memref<1x8x256xf32, #tpu.memory_space<vmem>>, vector<1x8x256xf32>,
    return
  }
  func.func @transform_0(%arg0: i32) -> (i32, i32, i32) {
    %c0_i32 = arith.constant 0 : i32
    %c0_i32_0 = arith.constant 0 : i32
    %c0_i32_1 = arith.constant 0 : i32
    return %arg0, %c0_i32, %c0_i32_0 : i32, i32, i32
  }
  func.func @transform_1(%arg0: i32) -> (i32, i32) {
    %c0_i32 = arith.constant 0 : i32
    %c0_i32_0 = arith.constant 0 : i32
    %c0_i32_1 = arith.constant 0 : i32
    return %c0_i32, %c0_i32_0 : i32, i32
  }
  func.func @transform_2(%arg0: i32) -> (i32, i32) {
    %c0_i32 = arith.constant 0 : i32
    %c0_i32_0 = arith.constant 0 : i32
    %c0_i32_1 = arith.constant 0 : i32
    return %c0_i32, %c0_i32_0 : i32, i32
  }
  func.func @transform_3(%arg0: i32) -> (i32, i32, i32) {
    %c0_i32 = arith.constant 0 : i32
    %c0_i32_0 = arith.constant 0 : i32
    %c0_i32_1 = arith.constant 0 : i32
    %c0_i32_2 = arith.constant 0 : i32
    return %c0_i32, %c0_i32_0, %c0_i32_1 : i32, i32, i32
  }
  func.func @transform_4(%arg0: i32) -> (i32, i32) {
    %c0_i32 = arith.constant 0 : i32
    %c0_i32_0 = arith.constant 0 : i32
    %c0_i32_1 = arith.constant 0 : i32
    return %c0_i32, %c0_i32_0 : i32, i32
  }
  func.func @transform_5(%arg0: i32) -> (i32, i32) {
    %c0_i32 = arith.constant 0 : i32
    %c0_i32_0 = arith.constant 0 : i32
    %c0_i32_1 = arith.constant 0 : i32
    return %c0_i32, %c0_i32_0 : i32, i32
  }
  func.func @transform_6(%arg0: i32) -> (i32, i32) {
    %c0_i32 = arith.constant 0 : i32
    %c0_i32_0 = arith.constant 0 : i32
    %c0_i32_1 = arith.constant 0 : i32
    return %c0_i32, %c0_i32_0 : i32, i32
  }
  func.func @transform_7(%arg0: i32) -> (i32, i32, i32) {
    %c0_i32 = arith.constant 0 : i32
    %c0_i32_0 = arith.constant 0 : i32
    %c0_i32_1 = arith.constant 0 : i32
    return %arg0, %c0_i32, %c0_i32_0 : i32, i32, i32
  }
}

module attributes {stable_mosaic.version = 11 : i64} {
  func.func @kernel(%arg0: i32, %arg1: memref<1x8x256xf32, #tpu.memory_space<vmem>>, %arg2: memref<48x8xf32, #tpu.memory_space<vmem>>, %arg3: memref<48x1xf32, #tpu.memory_space<vmem>>, %arg4: memref<9x48x256xf32, #tpu.memory_space<vmem>>, %arg5: memref<48x1xf32, #tpu.memory_space<vmem>>, %arg6: memref<8x48xf32, #tpu.memory_space<vmem>>, %arg7: memref<8x1xf32, #tpu.memory_space<vmem>>, %arg8: memref<1x8x256xf32, #tpu.memory_space<vmem>>) attributes {dimension_semantics = [#tpu.dimension_semantics<parallel>], iteration_bounds = array<i64: 8>, scalar_prefetch = 0 : i64, scratch_operands = 0 : i64, tpu.core_type = #tpu.core_type<tc>, window_params = [{transform_indices = @transform_0, window_bounds = array<i64: 1, 8, 256>}, {pipeline_mode = #tpu.pipeline_mode<synchronous>, transform_indices = @transform_1, window_bounds = array<i64: 48, 8>}, {pipeline_mode = #tpu.pipeline_mode<synchronous>, transform_indices = @transform_2, window_bounds = array<i64: 48, 1>}, {pipeline_mode = #tpu.pipeline_mode<synchronous>, transform_indices = @transform_3, window_bounds = array<i64: 9, 48, 256>}, {pipeline_mode = #tpu.pipeline_mode<synchronous>, transform_indices = @transform_4, window_bounds = array<i64: 48, 1>}, {pipeline_mode = #tpu.pipeline_mode<synchronous>, transform_indices = @transform_5, window_bounds = array<i64: 8, 48>}, {pipeline_mode = #tpu.pipeline_mode<synchronous>, transform_indices = @transform_6, window_bounds = array<i64: 8, 1>}, {transform_indices = @transform_7, window_bounds = array<i64: 1, 8, 256>}]} {
    %c0 = arith.constant 0 : index
    %c0_0 = arith.constant 0 : index
    %c0_1 = arith.constant 0 : index
    %0 = vector.load %arg1[%c0, %c0_0, %c0_1] : memref<1x8x256xf32, #tpu.memory_space<vmem>>, vector<1x8x256xf32>
    %1 = vector.shape_cast %0 : vector<1x8x256xf32> to vector<8x256xf32>
    %c0_2 = arith.constant 0 : index
    %c0_3 = arith.constant 0 : index
    %2 = vector.load %arg2[%c0_2, %c0_3] : memref<48x8xf32, #tpu.memory_space<vmem>>, vector<48x8xf32>
    %cst = arith.constant dense<0.000000e+00> : vector<48x256xf32>
    %3 = tpu.matmul %2, %1, %cst {dimension_numbers = #tpu.dot_dimension_numbers<[1], [0], [0], [1], [0, 0, 1, 1], [], []>} : vector<48x8xf32>, vector<8x256xf32>, vector<48x256xf32> -> vector<48x256xf32>
    %c0_4 = arith.constant 0 : index
    %c0_5 = arith.constant 0 : index
    %4 = vector.load %arg3[%c0_4, %c0_5] : memref<48x1xf32, #tpu.memory_space<vmem>>, vector<48x1xf32>
    %5 = vector.broadcast %4 : vector<48x1xf32> to vector<48x256xf32>
    %6 = arith.addf %3, %5 : vector<48x256xf32>
    %cst_6 = arith.constant 0.000000e+00 : f32
    %7 = vector.broadcast %cst_6 : f32 to vector<48x256xf32>
    %8 = arith.maximumf %6, %7 : vector<48x256xf32>
    %cst_7 = arith.constant 6.000000e+00 : f32
    %9 = vector.broadcast %cst_7 : f32 to vector<48x256xf32>
    %10 = arith.minimumf %8, %9 : vector<48x256xf32>
    %c4 = arith.constant 4 : index
    %c0_8 = arith.constant 0 : index
    %c0_9 = arith.constant 0 : index
    %11 = vector.load %arg4[%c4, %c0_8, %c0_9] : memref<9x48x256xf32, #tpu.memory_space<vmem>>, vector<1x48x256xf32>
    %12 = vector.shape_cast %11 : vector<1x48x256xf32> to vector<48x256xf32>
    %13 = arith.mulf %10, %12 : vector<48x256xf32>
    %c17_i32 = arith.constant 17 : i32
    %14 = tpu.dynamic_rotate %10 by %c17_i32 dim 1 : vector<48x256xf32>, i32 -> vector<48x256xf32>
    %c0_10 = arith.constant 0 : index
    %c0_11 = arith.constant 0 : index
    %c0_12 = arith.constant 0 : index
    %15 = vector.load %arg4[%c0_10, %c0_11, %c0_12] : memref<9x48x256xf32, #tpu.memory_space<vmem>>, vector<1x48x256xf32>
    %16 = vector.shape_cast %15 : vector<1x48x256xf32> to vector<48x256xf32>
    %17 = arith.mulf %14, %16 : vector<48x256xf32>
    %18 = arith.addf %13, %17 : vector<48x256xf32>
    %c16_i32 = arith.constant 16 : i32
    %19 = tpu.dynamic_rotate %10 by %c16_i32 dim 1 : vector<48x256xf32>, i32 -> vector<48x256xf32>
    %c1 = arith.constant 1 : index
    %c0_13 = arith.constant 0 : index
    %c0_14 = arith.constant 0 : index
    %20 = vector.load %arg4[%c1, %c0_13, %c0_14] : memref<9x48x256xf32, #tpu.memory_space<vmem>>, vector<1x48x256xf32>
    %21 = vector.shape_cast %20 : vector<1x48x256xf32> to vector<48x256xf32>
    %22 = arith.mulf %19, %21 : vector<48x256xf32>
    %23 = arith.addf %18, %22 : vector<48x256xf32>
    %c15_i32 = arith.constant 15 : i32
    %24 = tpu.dynamic_rotate %10 by %c15_i32 dim 1 : vector<48x256xf32>, i32 -> vector<48x256xf32>
    %c2 = arith.constant 2 : index
    %c0_15 = arith.constant 0 : index
    %c0_16 = arith.constant 0 : index
    %25 = vector.load %arg4[%c2, %c0_15, %c0_16] : memref<9x48x256xf32, #tpu.memory_space<vmem>>, vector<1x48x256xf32>
    %26 = vector.shape_cast %25 : vector<1x48x256xf32> to vector<48x256xf32>
    %27 = arith.mulf %24, %26 : vector<48x256xf32>
    %28 = arith.addf %23, %27 : vector<48x256xf32>
    %c1_i32 = arith.constant 1 : i32
    %29 = tpu.dynamic_rotate %10 by %c1_i32 dim 1 : vector<48x256xf32>, i32 -> vector<48x256xf32>
    %c3 = arith.constant 3 : index
    %c0_17 = arith.constant 0 : index
    %c0_18 = arith.constant 0 : index
    %30 = vector.load %arg4[%c3, %c0_17, %c0_18] : memref<9x48x256xf32, #tpu.memory_space<vmem>>, vector<1x48x256xf32>
    %31 = vector.shape_cast %30 : vector<1x48x256xf32> to vector<48x256xf32>
    %32 = arith.mulf %29, %31 : vector<48x256xf32>
    %33 = arith.addf %28, %32 : vector<48x256xf32>
    %c255_i32 = arith.constant 255 : i32
    %34 = tpu.dynamic_rotate %10 by %c255_i32 dim 1 : vector<48x256xf32>, i32 -> vector<48x256xf32>
    %c5 = arith.constant 5 : index
    %c0_19 = arith.constant 0 : index
    %c0_20 = arith.constant 0 : index
    %35 = vector.load %arg4[%c5, %c0_19, %c0_20] : memref<9x48x256xf32, #tpu.memory_space<vmem>>, vector<1x48x256xf32>
    %36 = vector.shape_cast %35 : vector<1x48x256xf32> to vector<48x256xf32>
    %37 = arith.mulf %34, %36 : vector<48x256xf32>
    %38 = arith.addf %33, %37 : vector<48x256xf32>
    %c241_i32 = arith.constant 241 : i32
    %39 = tpu.dynamic_rotate %10 by %c241_i32 dim 1 : vector<48x256xf32>, i32 -> vector<48x256xf32>
    %c6 = arith.constant 6 : index
    %c0_21 = arith.constant 0 : index
    %c0_22 = arith.constant 0 : index
    %40 = vector.load %arg4[%c6, %c0_21, %c0_22] : memref<9x48x256xf32, #tpu.memory_space<vmem>>, vector<1x48x256xf32>
    %41 = vector.shape_cast %40 : vector<1x48x256xf32> to vector<48x256xf32>
    %42 = arith.mulf %39, %41 : vector<48x256xf32>
    %43 = arith.addf %38, %42 : vector<48x256xf32>
    %c240_i32 = arith.constant 240 : i32
    %44 = tpu.dynamic_rotate %10 by %c240_i32 dim 1 : vector<48x256xf32>, i32 -> vector<48x256xf32>
    %c7 = arith.constant 7 : index
    %c0_23 = arith.constant 0 : index
    %c0_24 = arith.constant 0 : index
    %45 = vector.load %arg4[%c7, %c0_23, %c0_24] : memref<9x48x256xf32, #tpu.memory_space<vmem>>, vector<1x48x256xf32>
    %46 = vector.shape_cast %45 : vector<1x48x256xf32> to vector<48x256xf32>
    %47 = arith.mulf %44, %46 : vector<48x256xf32>
    %48 = arith.addf %43, %47 : vector<48x256xf32>
    %c239_i32 = arith.constant 239 : i32
    %49 = tpu.dynamic_rotate %10 by %c239_i32 dim 1 : vector<48x256xf32>, i32 -> vector<48x256xf32>
    %c8 = arith.constant 8 : index
    %c0_25 = arith.constant 0 : index
    %c0_26 = arith.constant 0 : index
    %50 = vector.load %arg4[%c8, %c0_25, %c0_26] : memref<9x48x256xf32, #tpu.memory_space<vmem>>, vector<1x48x256xf32>
    %51 = vector.shape_cast %50 : vector<1x48x256xf32> to vector<48x256xf32>
    %52 = arith.mulf %49, %51 : vector<48x256xf32>
    %53 = arith.addf %48, %52 : vector<48x256xf32>
    %c0_27 = arith.constant 0 : index
    %c0_28 = arith.constant 0 : index
    %54 = vector.load %arg5[%c0_27, %c0_28] : memref<48x1xf32, #tpu.memory_space<vmem>>, vector<48x1xf32>
    %55 = vector.broadcast %54 : vector<48x1xf32> to vector<48x256xf32>
    %56 = arith.addf %53, %55 : vector<48x256xf32>
    %cst_29 = arith.constant 0.000000e+00 : f32
    %57 = vector.broadcast %cst_29 : f32 to vector<48x256xf32>
    %58 = arith.maximumf %56, %57 : vector<48x256xf32>
    %cst_30 = arith.constant 6.000000e+00 : f32
    %59 = vector.broadcast %cst_30 : f32 to vector<48x256xf32>
    %60 = arith.minimumf %58, %59 : vector<48x256xf32>
    %c0_31 = arith.constant 0 : index
    %c0_32 = arith.constant 0 : index
    %61 = vector.load %arg6[%c0_31, %c0_32] : memref<8x48xf32, #tpu.memory_space<vmem>>, vector<8x48xf32>
    %cst_33 = arith.constant dense<0.000000e+00> : vector<8x256xf32>
    %62 = tpu.matmul %61, %60, %cst_33 {dimension_numbers = #tpu.dot_dimension_numbers<[1], [0], [0], [1], [0, 0, 1, 1], [], []>} : vector<8x48xf32>, vector<48x256xf32>, vector<8x256xf32> -> vector<8x256xf32>
    %c0_34 = arith.constant 0 : index
    %c0_35 = arith.constant 0 : index
    %63 = vector.load %arg7[%c0_34, %c0_35] : memref<8x1xf32, #tpu.memory_space<vmem>>, vector<8x1xf32>
    %64 = vector.broadcast %63 : vector<8x1xf32> to vector<8x256xf32>
    %65 = arith.addf %62, %64 : vector<8x256xf32>
    %66 = arith.addf %65, %1 : vector<8x256xf32>
    %c0_36 = arith.constant 0 : index
    %c0_37 = arith.constant 0 : index
    %c0_38 = arith.constant 0 : index
    %67 = vector.load %arg8[%c0_36, %c0_37, %c0_38] : memref<1x8x256xf32, #tpu.memory_space<vmem>>, vector<1x8x256xf32>
    %68 = vector.shape_cast %67 : vector<1x8x256xf32> to vector<8x256xf32>
    %69 = vector.shape_cast %66 : vector<8x256xf32> to vector<1x8x256xf32>
    tpu.vector_store %arg8[%c0_36, %c0_37, %c0_38], %69 {strides = array<i32>} : memref<1x8x256xf32, #tpu.memory_space<vmem>>, vector<1x8x256xf32>,
    return
  }
  func.func @transform_0(%arg0: i32) -> (i32, i32, i32) {
    %c0_i32 = arith.constant 0 : i32
    %c0_i32_0 = arith.constant 0 : i32
    %c0_i32_1 = arith.constant 0 : i32
    return %arg0, %c0_i32, %c0_i32_0 : i32, i32, i32
  }
  func.func @transform_1(%arg0: i32) -> (i32, i32) {
    %c0_i32 = arith.constant 0 : i32
    %c0_i32_0 = arith.constant 0 : i32
    %c0_i32_1 = arith.constant 0 : i32
    return %c0_i32, %c0_i32_0 : i32, i32
  }
  func.func @transform_2(%arg0: i32) -> (i32, i32) {
    %c0_i32 = arith.constant 0 : i32
    %c0_i32_0 = arith.constant 0 : i32
    %c0_i32_1 = arith.constant 0 : i32
    return %c0_i32, %c0_i32_0 : i32, i32
  }
  func.func @transform_3(%arg0: i32) -> (i32, i32, i32) {
    %c0_i32 = arith.constant 0 : i32
    %c0_i32_0 = arith.constant 0 : i32
    %c0_i32_1 = arith.constant 0 : i32
    %c0_i32_2 = arith.constant 0 : i32
    return %c0_i32, %c0_i32_0, %c0_i32_1 : i32, i32, i32
  }
  func.func @transform_4(%arg0: i32) -> (i32, i32) {
    %c0_i32 = arith.constant 0 : i32
    %c0_i32_0 = arith.constant 0 : i32
    %c0_i32_1 = arith.constant 0 : i32
    return %c0_i32, %c0_i32_0 : i32, i32
  }
  func.func @transform_5(%arg0: i32) -> (i32, i32) {
    %c0_i32 = arith.constant 0 : i32
    %c0_i32_0 = arith.constant 0 : i32
    %c0_i32_1 = arith.constant 0 : i32
    return %c0_i32, %c0_i32_0 : i32, i32
  }
  func.func @transform_6(%arg0: i32) -> (i32, i32) {
    %c0_i32 = arith.constant 0 : i32
    %c0_i32_0 = arith.constant 0 : i32
    %c0_i32_1 = arith.constant 0 : i32
    return %c0_i32, %c0_i32_0 : i32, i32
  }
  func.func @transform_7(%arg0: i32) -> (i32, i32, i32) {
    %c0_i32 = arith.constant 0 : i32
    %c0_i32_0 = arith.constant 0 : i32
    %c0_i32_1 = arith.constant 0 : i32
    return %arg0, %c0_i32, %c0_i32_0 : i32, i32, i32
  }
}

</mosaic_0001>

<llo_original>
// kernel: tpu_custom_call.1
$region0: #{tpu_custom_call.1}
  #allocation0 [shape = 'u32[]', space=smem, size = 0x4, offset = 0x4, fixed_abs, tag = 'smem constant byte address 0x4 - core index']
  #allocation1 [shape = 'u32[144,128]{1,0:T(1,128)}', space=vmem, size = 0x12000, scoped, tag = 'internal scratch']
  %s0 = inlined_call_operand.vmem [shape: f32[8,8,256], index: 0, kind: input, shape index: {}]
  %s1 = inlined_call_operand.vmem [shape: f32[48,8], index: 1, kind: input, shape index: {}]
  %s2 = inlined_call_operand.vmem [shape: f32[48,1], index: 2, kind: input, shape index: {}]
  %s3 = inlined_call_operand.hbm [shape: f32[9,48,256], index: 3, kind: input, shape index: {}]
  %s4 = inlined_call_operand.vmem [shape: f32[48,1], index: 4, kind: input, shape index: {}]
  %s5 = inlined_call_operand.vmem [shape: f32[8,48], index: 5, kind: input, shape index: {}]
  %s6 = inlined_call_operand.vmem [shape: f32[8,1], index: 6, kind: input, shape index: {}]
  %s7 = inlined_call_operand.hbm [shape: f32[8,8,256], index: 7, kind: output, shape index: {}]
  %s8 = sld [smem:[#allocation0]]
  $region65: #{tpu_custom_call.1} parent=0
    _
  %s10 = ssub.s32 1, %s8
  %s11 = scalar_select 0, %s10, %s8
  $region1: #{tpu_custom_call.1} parent=0
    #allocation2 [shape = 'u8[442368]{0}', space=vmem, size = 0x6c000, scoped, tag = 'input window, operand 3, single buffered']
    #allocation3 [shape = 's32[2]{0}', space=sflag, size = 0x8, scoped, tag = 'scoped memory for tpu_custom_call.1']
    #allocation4 [shape = 's32[2]{0}', space=sflag, size = 0x8, scoped, tag = 'scoped memory for tpu_custom_call.1']
    #allocation5 [shape = 'u8[16384]{0}', space=vmem, size = 0x4000, scoped, tag = 'output window, operand 0']
    %12 = vsyncpa [#allocation3], 0
    %13 = vsyncpa [#allocation4], 0
    %s14 = scalar_lea.sflag [#allocation4], 1
    %15 = vsyncpa %s14, 0
    loop: start=0, step=1, limit=10
    $region2: #{tpu_custom_call.1} parent=1 // loop_pre_header
      _
    $region3: #{tpu_custom_call.1} parent=1 // loop_header
      %s17 = sphi 0, %s21
      %p18 = scmp.ge.s32.totalorder %s17, 10
      %s27 = sphi 0, %s29
      %s30 = sphi 0, %s27
      %s31 = sphi 0, %s30
      %s47 = sphi 0, %s31
      %s51 = sphi 0, %s51
      %s53 = sphi 0, %s51
      %s54 = sphi 0, %s53
      %s68 = sphi 0, %s54
      %s72 = sphi 0, %s72
      %s74 = sphi 0, %s72
      %s75 = sphi 0, %s74
      %s89 = sphi 0, %s75
      %s93 = sphi 0, %s93
      %s95 = sphi 0, %s93
      %s96 = sphi 0, %s95
      %s110 = sphi 0, %s96
      %s114 = sphi 0, %s114
      %s116 = sphi 0, %s114
      %s117 = sphi 0, %s116
      %s131 = sphi 0, %s117
      %s135 = sphi 0, %s135
      %s137 = sphi 0, %s135
      %s138 = sphi 0, %s137
      %s152 = sphi 0, %s138
      %s156 = sphi 0, %s156
      %s158 = sphi 0, %s156
      %s159 = sphi 0, %s158
      %s173 = sphi 0, %s159
      %s179 = sphi 0, %s181
      %s182 = sphi 0, %s179
      %s183 = sphi 0, %s182
      %s199 = sphi 0, %s183
    $region4: #{tpu_custom_call.1} parent=1 // loop_header_branch
      %20 = sbr.rel (%p18) target = $region8
    $region5: #{tpu_custom_call.1} parent=1 // loop_body
      %s22 = ssub.s32 %s17, 1
      %s23 = ssub.s32 %s17, 2
      %s24 = sadd.s32 %s17, 1
      %s25 = ssub.s32 %s17, %s24
      %p26 = scmp.eq.s32.totalorder %s25, 0
      %s28 = sadd.s32 %s27, 1
      %s29 = scalar_select %p26, %s27, %s28
      %p32 = pneg %p26
      %p33 = scmp.eq.s32.totalorder %s17, 7
      %p34 = por %p32, %p33
      %p35 = scmp.ne.s32.totalorder %s27, %s30
      %p36 = scmp.eq.s32.totalorder %s17, 0
      %p37 = por %p35, %p36
      %p38 = scmp.ne.s32.totalorder %s27, %s30
      %p39 = scmp.eq.s32.totalorder %s22, 7
      %p40 = por %p38, %p39
      %p41 = scmp.ne.s32.totalorder %s30, %s31
      %p42 = scmp.eq.s32.totalorder %s22, 0
      %p43 = por %p41, %p42
      %p44 = scmp.ne.s32.totalorder %s30, %s31
      %p45 = scmp.eq.s32.totalorder %s23, 7
      %p46 = por %p44, %p45
      %p48 = scmp.ne.s32.totalorder %s31, %s47
      %p49 = scmp.eq.s32.totalorder %s23, 0
      %p50 = por %p48, %p49
      %s52 = sadd.s32 %s51, 1
      %p55 = scmp.eq.s32.totalorder %s17, 7
      %p56 = scmp.ne.s32.totalorder %s51, %s53
      %p57 = scmp.eq.s32.totalorder %s17, 0
      %p58 = por %p56, %p57
      %p59 = scmp.ne.s32.totalorder %s51, %s53
      %p60 = scmp.eq.s32.totalorder %s22, 7
      %p61 = por %p59, %p60
      %p62 = scmp.ne.s32.totalorder %s53, %s54
      %p63 = scmp.eq.s32.totalorder %s22, 0
      %p64 = por %p62, %p63
      %p65 = scmp.ne.s32.totalorder %s53, %s54
      %p66 = scmp.eq.s32.totalorder %s23, 7
      %p67 = por %p65, %p66
      %p69 = scmp.ne.s32.totalorder %s54, %s68
      %p70 = scmp.eq.s32.totalorder %s23, 0
      %p71 = por %p69, %p70
      %s73 = sadd.s32 %s72, 1
      %p76 = scmp.eq.s32.totalorder %s17, 7
      %p77 = scmp.ne.s32.totalorder %s72, %s74
      %p78 = scmp.eq.s32.totalorder %s17, 0
      %p79 = por %p77, %p78
      %p80 = scmp.ne.s32.totalorder %s72, %s74
      %p81 = scmp.eq.s32.totalorder %s22, 7
      %p82 = por %p80, %p81
      %p83 = scmp.ne.s32.totalorder %s74, %s75
      %p84 = scmp.eq.s32.totalorder %s22, 0
      %p85 = por %p83, %p84
      %p86 = scmp.ne.s32.totalorder %s74, %s75
      %p87 = scmp.eq.s32.totalorder %s23, 7
      %p88 = por %p86, %p87
      %p90 = scmp.ne.s32.totalorder %s75, %s89
      %p91 = scmp.eq.s32.totalorder %s23, 0
      %p92 = por %p90, %p91
      %s94 = sadd.s32 %s93, 1
      %p97 = scmp.eq.s32.totalorder %s17, 7
      %p98 = scmp.ne.s32.totalorder %s93, %s95
      %p99 = scmp.eq.s32.totalorder %s17, 0
      %p100 = por %p98, %p99
      %p101 = scmp.ne.s32.totalorder %s93, %s95
      %p102 = scmp.eq.s32.totalorder %s22, 7
      %p103 = por %p101, %p102
      %p104 = scmp.ne.s32.totalorder %s95, %s96
      %p105 = scmp.eq.s32.totalorder %s22, 0
      %p106 = por %p104, %p105
      %p107 = scmp.ne.s32.totalorder %s95, %s96
      %p108 = scmp.eq.s32.totalorder %s23, 7
      %p109 = por %p107, %p108
      %p111 = scmp.ne.s32.totalorder %s96, %s110
      %p112 = scmp.eq.s32.totalorder %s23, 0
      %p113 = por %p111, %p112
      %s115 = sadd.s32 %s114, 1
      %p118 = scmp.eq.s32.totalorder %s17, 7
      %p119 = scmp.ne.s32.totalorder %s114, %s116
      %p120 = scmp.eq.s32.totalorder %s17, 0
      %p121 = por %p119, %p120
      %p122 = scmp.ne.s32.totalorder %s114, %s116
      %p123 = scmp.eq.s32.totalorder %s22, 7
      %p124 = por %p122, %p123
      %p125 = scmp.ne.s32.totalorder %s116, %s117
      %p126 = scmp.eq.s32.totalorder %s22, 0
      %p127 = por %p125, %p126
      %p128 = scmp.ne.s32.totalorder %s116, %s117
      %p129 = scmp.eq.s32.totalorder %s23, 7
      %p130 = por %p128, %p129
      %p132 = scmp.ne.s32.totalorder %s117, %s131
      %p133 = scmp.eq.s32.totalorder %s23, 0
      %p134 = por %p132, %p133
      %s136 = sadd.s32 %s135, 1
      %p139 = scmp.eq.s32.totalorder %s17, 7
      %p140 = scmp.ne.s32.totalorder %s135, %s137
      %p141 = scmp.eq.s32.totalorder %s17, 0
      %p142 = por %p140, %p141
      %p143 = scmp.ne.s32.totalorder %s135, %s137
      %p144 = scmp.eq.s32.totalorder %s22, 7
      %p145 = por %p143, %p144
      %p146 = scmp.ne.s32.totalorder %s137, %s138
      %p147 = scmp.eq.s32.totalorder %s22, 0
      %p148 = por %p146, %p147
      %p149 = scmp.ne.s32.totalorder %s137, %s138
      %p150 = scmp.eq.s32.totalorder %s23, 7
      %p151 = por %p149, %p150
      %p153 = scmp.ne.s32.totalorder %s138, %s152
      %p154 = scmp.eq.s32.totalorder %s23, 0
      %p155 = por %p153, %p154
      %s157 = sadd.s32 %s156, 1
      %p160 = scmp.eq.s32.totalorder %s17, 7
      %p161 = scmp.ne.s32.totalorder %s156, %s158
      %p162 = scmp.eq.s32.totalorder %s17, 0
      %p163 = por %p161, %p162
      %p164 = scmp.ne.s32.totalorder %s156, %s158
      %p165 = scmp.eq.s32.totalorder %s22, 7
      %p166 = por %p164, %p165
      %p167 = scmp.ne.s32.totalorder %s158, %s159
      %p168 = scmp.eq.s32.totalorder %s22, 0
      %p169 = por %p167, %p168
      %p170 = scmp.ne.s32.totalorder %s158, %s159
      %p171 = scmp.eq.s32.totalorder %s23, 7
      %p172 = por %p170, %p171
      %p174 = scmp.ne.s32.totalorder %s159, %s173
      %p175 = scmp.eq.s32.totalorder %s23, 0
      %p176 = por %p174, %p175
      %s177 = ssub.s32 %s17, %s24
      %p178 = scmp.eq.s32.totalorder %s177, 0
      %s180 = sadd.s32 %s179, 1
      %s181 = scalar_select %p178, %s179, %s180
      %p184 = pneg %p178
      %p185 = scmp.eq.s32.totalorder %s17, 7
      %p186 = por %p184, %p185
      %p187 = scmp.ne.s32.totalorder %s179, %s182
      %p188 = scmp.eq.s32.totalorder %s17, 0
      %p189 = por %p187, %p188
      %p190 = scmp.ne.s32.totalorder %s179, %s182
      %p191 = scmp.eq.s32.totalorder %s22, 7
      %p192 = por %p190, %p191
      %p193 = scmp.ne.s32.totalorder %s182, %s183
      %p194 = scmp.eq.s32.totalorder %s22, 0
      %p195 = por %p193, %p194
      %p196 = scmp.ne.s32.totalorder %s182, %s183
      %p197 = scmp.eq.s32.totalorder %s23, 7
      %p198 = por %p196, %p197
      %p200 = scmp.ne.s32.totalorder %s183, %s199
      %p201 = scmp.eq.s32.totalorder %s23, 0
      %p202 = por %p200, %p201
      %p203 = scmp.le.s32.totalorder 1, %s17
      %p204 = scmp.lt.s32.totalorder %s17, 9
      %p205 = pnand %p203, %p204
      %p206 = pneg %p205
      // Predicated region
      $region9: #{tpu_custom_call.1} parent=5 // pred_check
        _
      $region10: #{tpu_custom_call.1} parent=5 // pred_check_branch
        %208 = sbr.rel (%p205) target = $region12
      $region11: #{tpu_custom_call.1} parent=5 // pred_region
        %s209 = ssub.s32 %s17, 1
        // Predicated region
        $region13: #{tpu_custom_call.1} parent=11 // pred_check
          %p210 = pneg %p64
        $region14: #{tpu_custom_call.1} parent=11 // pred_check_branch
          %212 = sbr.rel (%p210) target = $region16
        $region15: #{tpu_custom_call.1} parent=11 // pred_region
          _
        $region16: #{tpu_custom_call.1} parent=11 // pred_fallthru
          _
        // Predicated region
        $region17: #{tpu_custom_call.1} parent=11 // pred_check
          %p213 = pneg %p85
        $region18: #{tpu_custom_call.1} parent=11 // pred_check_branch
          %215 = sbr.rel (%p213) target = $region20
        $region19: #{tpu_custom_call.1} parent=11 // pred_region
          _
        $region20: #{tpu_custom_call.1} parent=11 // pred_fallthru
          _
        // Predicated region
        $region21: #{tpu_custom_call.1} parent=11 // pred_check
          %p216 = pneg %p106
        $region22: #{tpu_custom_call.1} parent=11 // pred_check_branch
          %218 = sbr.rel (%p216) target = $region24
        $region23: #{tpu_custom_call.1} parent=11 // pred_region
          %s220 = ssub.s32 13824, 13824
          %221 = vsyncadd [#allocation3], %s220
          %s222 = sshll.u32 [#allocation2], 4
          %s223 = int_to_ptr.vmem [resolvable:$true] %s222
          %228 = dma.hbm_to_vmem [thread:$0]  %s3, 13824, %s223, [#allocation3], 256, 256, 16
        $region24: #{tpu_custom_call.1} parent=11 // pred_fallthru
          _
        // Predicated region
        $region25: #{tpu_custom_call.1} parent=11 // pred_check
          %p229 = pneg %p127
        $region26: #{tpu_custom_call.1} parent=11 // pred_check_branch
          %231 = sbr.rel (%p229) target = $region28
        $region27: #{tpu_custom_call.1} parent=11 // pred_region
          _
        $region28: #{tpu_custom_call.1} parent=11 // pred_fallthru
          _
        // Predicated region
        $region29: #{tpu_custom_call.1} parent=11 // pred_check
          %p232 = pneg %p148
        $region30: #{tpu_custom_call.1} parent=11 // pred_check_branch
          %234 = sbr.rel (%p232) target = $region32
        $region31: #{tpu_custom_call.1} parent=11 // pred_region
          _
        $region32: #{tpu_custom_call.1} parent=11 // pred_fallthru
          _
        // Predicated region
        $region33: #{tpu_custom_call.1} parent=11 // pred_check
          %p235 = pneg %p169
        $region34: #{tpu_custom_call.1} parent=11 // pred_check_branch
          %237 = sbr.rel (%p235) target = $region36
        $region35: #{tpu_custom_call.1} parent=11 // pred_region
          _
        $region36: #{tpu_custom_call.1} parent=11 // pred_fallthru
          _
      $region12: #{tpu_custom_call.1} parent=5 // pred_fallthru
        _
      %p238 = scmp.lt.s32.totalorder %s17, 8
      // Predicated region
      $region37: #{tpu_custom_call.1} parent=5 // pred_check
        %p239 = pneg %p238
      $region38: #{tpu_custom_call.1} parent=5 // pred_check_branch
        %241 = sbr.rel (%p239) target = $region40
      $region39: #{tpu_custom_call.1} parent=5 // pred_region
        // Predicated region
        $region41: #{tpu_custom_call.1} parent=39 // pred_check
          %p242 = pneg %p37
        $region42: #{tpu_custom_call.1} parent=39 // pred_check_branch
          %244 = sbr.rel (%p242) target = $region44
        $region43: #{tpu_custom_call.1} parent=39 // pred_region
          %p245 = scmp.lt.s32.totalorder %s17, 7
          %s246 = scalar_select %p245, %s17, 7
          %s247 = smul.addr %s246, 2
          %s248 = smul.addr %s247, 8
          %s249 = scalar_lea.vmem %s0, %s248
        $region44: #{tpu_custom_call.1} parent=39 // pred_fallthru
          _
      $region40: #{tpu_custom_call.1} parent=5 // pred_fallthru
        _
      %p250 = scmp.le.s32.totalorder 1, %s17
      %p251 = scmp.lt.s32.totalorder %s17, 9
      %p252 = pnand %p250, %p251
      %p253 = pneg %p252
      // Predicated region
      $region45: #{tpu_custom_call.1} parent=5 // pred_check
        _
      $region46: #{tpu_custom_call.1} parent=5 // pred_check_branch
        %255 = sbr.rel (%p252) target = $region48
      $region47: #{tpu_custom_call.1} parent=5 // pred_region
        %s256 = ssub.s32 %s17, 1
        // Predicated region
        $region49: #{tpu_custom_call.1} parent=47 // pred_check
          %p257 = pneg %p106
        $region50: #{tpu_custom_call.1} parent=47 // pred_check_branch
          %259 = sbr.rel (%p257) target = $region52
        $region51: #{tpu_custom_call.1} parent=47 // pred_region
          %260 = dma.done [#allocation3], 13824
        $region52: #{tpu_custom_call.1} parent=47 // pred_fallthru
          _
        %p261 = scmp.lt.s32.totalorder %s22, 7
        %s262 = scalar_select %p261, %s22, 7
        %s263 = smul.addr %s262, 2
        %s264 = smul.addr %s263, 8
        %s265 = scalar_lea.vmem %s0, %s264
        %p266 = pneg %p43
        %p267 = pneg %p40
        %p268 = pneg %p64
        %p269 = pneg %p61
        %p270 = pneg %p85
        %p271 = pneg %p82
        %p272 = pneg %p106
        %p273 = pneg %p103
        %p274 = pneg %p127
        %p275 = pneg %p124
        %p276 = pneg %p148
        %p277 = pneg %p145
        %p278 = pneg %p169
        %p279 = pneg %p166
        %p280 = pneg %p195
        %p281 = pneg %p192
        %s282 = sand.u32 %s182, 1
        %s283 = scalar_lea.sflag [#allocation4], %s282
        %s284 = sand.u32 %s182, 1
        %s285 = smul.addr %s284, 16
        %s286 = scalar_lea.vmem [#allocation5], %s285
        %p287 = scmp.lt.s32.totalorder %s22, 7
        %s288 = scalar_select %p287, %s22, 7
        %s289 = smul.addr %s288, 2
        %s290 = smul.addr %s289, 8
        %s291 = scalar_lea.vmem %s0, %s290
        %v292 = vld [vmem:[%s291] sm:$0xff]
        %v293 = vld [vmem:[%s291 + $0x8] sm:$0xff]
        %v294 = vld [vmem:[%s1] sm:$0xff]
        %v295 = vld [vmem:[%s1 + $0x8] sm:$0xff]
        %v296 = vld [vmem:[%s1 + $0x10] sm:$0xff]
        %v297 = vld [vmem:[%s1 + $0x18] sm:$0xff]
        %v298 = vld [vmem:[%s1 + $0x20] sm:$0xff]
        %v299 = vld [vmem:[%s1 + $0x28] sm:$0xff]
        %v300 = vld [vmem:[%s2] sm:$0xff]
        %v301 = vld [vmem:[%s2 + $0x8] sm:$0xff]
        %v302 = vld [vmem:[%s2 + $0x10] sm:$0xff]
        %v303 = vld [vmem:[%s2 + $0x18] sm:$0xff]
        %v304 = vld [vmem:[%s2 + $0x20] sm:$0xff]
        %v305 = vld [vmem:[%s2 + $0x28] sm:$0xff]
        %307 = vset.pattern.permute.xlu0 0
        %308 = vperm.xlu0 %307, %v300
        %v309 = vpop.permute.xlu0 %308
        %312 = vset.pattern.permute.xlu0 0
        %313 = vperm.xlu0 %312, %v301
        %v314 = vpop.permute.xlu0 %313
        %317 = vset.pattern.permute.xlu0 0
        %318 = vperm.xlu0 %317, %v302
        %v319 = vpop.permute.xlu0 %318
        %322 = vset.pattern.permute.xlu0 0
        %323 = vperm.xlu0 %322, %v303
        %v324 = vpop.permute.xlu0 %323
        %327 = vset.pattern.permute.xlu0 0
        %328 = vperm.xlu0 %327, %v304
        %v329 = vpop.permute.xlu0 %328
        %332 = vset.pattern.permute.xlu0 0
        %333 = vperm.xlu0 %332, %v305
        %v334 = vpop.permute.xlu0 %333
        %vm336 = vcmask 64512
        %v338 = vsel %vm336, %v294, 0
        %v341 = vsel %vm336, %v295, 0
        %v344 = vsel %vm336, %v296, 0
        %v347 = vsel %vm336, %v297, 0
        %v350 = vsel %vm336, %v298, 0
        %v353 = vsel %vm336, %v299, 0
        %355 = vmatprep.subr.mxu0 %v293
        %356 = vmatpush1.msra.mxu0 %v292
        %357 = vmatprep.subr.mxu0 0.0
        %358 = vmatpush1.msra.mxu0 0.0
        %359 = vmatprep.subr.mxu0 0.0
        %360 = vmatpush1.msra.mxu0 0.0
        %361 = vmatprep.subr.mxu0 0.0
        %362 = vmatpush1.msra.mxu0 0.0
        %363 = vmatprep.subr.mxu0 0.0
        %364 = vmatpush1.msra.mxu0 0.0
        %365 = vmatprep.subr.mxu0 0.0
        %366 = vmatpush1.msra.mxu0 0.0
        %367 = vmatprep.subr.mxu0 0.0
        %368 = vmatpush1.msra.mxu0 0.0
        %369 = vmatprep.subr.mxu0 0.0
        %370 = vmatpush1.msra.mxu0 0.0
        %371 = vmatprep.subr.mxu0 0.0
        %372 = vmatpush1.msra.mxu0 0.0
        %373 = vmatprep.subr.mxu0 0.0
        %374 = vmatpush1.msra.mxu0 0.0
        %375 = vmatprep.subr.mxu0 0.0
        %376 = vmatpush1.msra.mxu0 0.0
        %377 = vmatprep.subr.mxu0 0.0
        %378 = vmatpush1.msra.mxu0 0.0
        %379 = vmatprep.subr.mxu0 0.0
        %380 = vmatpush1.msra.mxu0 0.0
        %381 = vmatprep.subr.mxu0 0.0
        %382 = vmatpush1.msra.mxu0 0.0
        %383 = vmatprep.subr.mxu0 0.0
        %384 = vmatpush1.msra.mxu0 0.0
        %385 = vmatprep.subr.mxu0 0.0
        %386 = vmatpush1.msra.mxu0 0.0
        %387 = vmatprep.subr.mxu0 0.0
        %388 = vmatpush1.msra.mxu0 0.0
        %389 = vmatprep.subr.mxu0 0.0
        %390 = vmatpush1.msra.mxu0 0.0
        %391 = vmatprep.subr.mxu0 0.0
        %392 = vmatpush1.msra.mxu0 0.0
        %393 = vmatprep.subr.mxu0 0.0
        %394 = vmatpush1.msra.mxu0 0.0
        %395 = vmatprep.subr.mxu0 0.0
        %396 = vmatpush1.msra.mxu0 0.0
        %397 = vmatprep.subr.mxu0 0.0
        %398 = vmatpush1.msra.mxu0 0.0
        %399 = vmatprep.subr.mxu0 0.0
        %400 = vmatpush1.msra.mxu0 0.0
        %401 = vmatprep.subr.mxu0 0.0
        %402 = vmatpush1.msra.mxu0 0.0
        %403 = vmatprep.subr.mxu0 0.0
        %404 = vmatpush1.msra.mxu0 0.0
        %405 = vmatprep.subr.mxu0 0.0
        %406 = vmatpush1.msra.mxu0 0.0
        %407 = vmatprep.subr.mxu0 0.0
        %408 = vmatpush1.msra.mxu0 0.0
        %409 = vmatprep.subr.mxu0 0.0
        %410 = vmatpush1.msra.mxu0 0.0
        %411 = vmatprep.subr.mxu0 0.0
        %412 = vmatpush1.msra.mxu0 0.0
        %413 = vmatprep.subr.mxu0 0.0
        %414 = vmatpush1.msra.mxu0 0.0
        %415 = vmatprep.subr.mxu0 0.0
        %416 = vmatpush1.msra.mxu0 0.0
        %417 = vmatprep.subr.mxu0 0.0
        %418 = vmatpush1.msra.mxu0 0.0
        %419 = vmatprep.mubr.f32.mxu0 0.0
        %420 = vmatmul.mubr.f32.gmra.mrb[0].mxu0 %v338
        %v421 = vpop.f32.mrb[0].mxu0
        %v422 = vadd.f32 %v309, %v421
        %v423 = vpop.f32.mrb[0].mxu0
        %v424 = vadd.f32 %v309, %v423
        %425 = vmatprep.mubr.f32.mxu0 0.0
        %426 = vmatmul.mubr.f32.gmra.mrb[0].mxu0 %v341
        %v427 = vpop.f32.mrb[0].mxu0
        %v428 = vadd.f32 %v314, %v427
        %v429 = vpop.f32.mrb[0].mxu0
        %v430 = vadd.f32 %v314, %v429
        %431 = vmatprep.mubr.f32.mxu0 0.0
        %432 = vmatmul.mubr.f32.gmra.mrb[0].mxu0 %v344
        %v433 = vpop.f32.mrb[0].mxu0
        %v434 = vadd.f32 %v319, %v433
        %v435 = vpop.f32.mrb[0].mxu0
        %v436 = vadd.f32 %v319, %v435
        %437 = vmatprep.mubr.f32.mxu0 0.0
        %438 = vmatmul.mubr.f32.gmra.mrb[0].mxu0 %v347
        %v439 = vpop.f32.mrb[0].mxu0
        %v440 = vadd.f32 %v324, %v439
        %v441 = vpop.f32.mrb[0].mxu0
        %v442 = vadd.f32 %v324, %v441
        %443 = vmatprep.mubr.f32.mxu0 0.0
        %444 = vmatmul.mubr.f32.gmra.mrb[0].mxu0 %v350
        %v445 = vpop.f32.mrb[0].mxu0
        %v446 = vadd.f32 %v329, %v445
        %v447 = vpop.f32.mrb[0].mxu0
        %v448 = vadd.f32 %v329, %v447
        %449 = vmatprep.mubr.f32.mxu0 0.0
        %450 = vmatmul.mubr.f32.gmra.mrb[0].mxu0 %v353
        %v451 = vpop.f32.mrb[0].mxu0
        %v452 = vadd.f32 %v334, %v451
        %v453 = vpop.f32.mrb[0].mxu0
        %v454 = vadd.f32 %v334, %v453
        %455 = vdwg.mxu0
        %v456 = vmax.f32 %v422, 0.0
        %v457 = vmax.f32 %v424, 0.0
        %v458 = vmax.f32 %v428, 0.0
        %v459 = vmax.f32 %v430, 0.0
        %v460 = vmax.f32 %v434, 0.0
        %v461 = vmax.f32 %v436, 0.0
        %v462 = vmax.f32 %v440, 0.0
        %v463 = vmax.f32 %v442, 0.0
        %v464 = vmax.f32 %v446, 0.0
        %v465 = vmax.f32 %v448, 0.0
        %v466 = vmax.f32 %v452, 0.0
        %v467 = vmax.f32 %v454, 0.0
        %v468 = vmin.f32 %v456, 6.0
        %v469 = vmin.f32 %v457, 6.0
        %v470 = vmin.f32 %v458, 6.0
        %v471 = vmin.f32 %v459, 6.0
        %v472 = vmin.f32 %v460, 6.0
        %v473 = vmin.f32 %v461, 6.0
        %v474 = vmin.f32 %v462, 6.0
        %v475 = vmin.f32 %v463, 6.0
        %v476 = vmin.f32 %v464, 6.0
        %v477 = vmin.f32 %v465, 6.0
        %v478 = vmin.f32 %v466, 6.0
        %v479 = vmin.f32 %v467, 6.0
        %s480 = scalar_lea.vmem [#allocation2], 384
        %v481 = vld [vmem:[%s480] sm:$0xff]
        %v482 = vld [vmem:[%s480 + $0x8] sm:$0xff]
        %v483 = vld [vmem:[%s480 + $0x10] sm:$0xff]
        %v484 = vld [vmem:[%s480 + $0x18] sm:$0xff]
        %v485 = vld [vmem:[%s480 + $0x20] sm:$0xff]
        %v486 = vld [vmem:[%s480 + $0x28] sm:$0xff]
        %v487 = vld [vmem:[%s480 + $0x30] sm:$0xff]
        %v488 = vld [vmem:[%s480 + $0x38] sm:$0xff]
        %v489 = vld [vmem:[%s480 + $0x40] sm:$0xff]
        %v490 = vld [vmem:[%s480 + $0x48] sm:$0xff]
        %v491 = vld [vmem:[%s480 + $0x50] sm:$0xff]
        %v492 = vld [vmem:[%s480 + $0x58] sm:$0xff]
        %v493 = vmul.f32 %v468, %v481
        %v494 = vmul.f32 %v469, %v482
        %v495 = vmul.f32 %v470, %v483
        %v496 = vmul.f32 %v471, %v484
        %v497 = vmul.f32 %v472, %v485
        %v498 = vmul.f32 %v473, %v486
        %v499 = vmul.f32 %v474, %v487
        %v500 = vmul.f32 %v475, %v488
        %v501 = vmul.f32 %v476, %v489
        %v502 = vmul.f32 %v477, %v490
        %v503 = vmul.f32 %v478, %v491
        %v504 = vmul.f32 %v479, %v492
        %505 = vrot.lane.b32.xlu0 %v468, 17
        %v506 = vpop.permute.xlu0 %505
        %507 = vrot.lane.b32.xlu0 %v470, 17
        %v508 = vpop.permute.xlu0 %507
        %509 = vrot.lane.b32.xlu0 %v472, 17
        %v510 = vpop.permute.xlu0 %509
        %511 = vrot.lane.b32.xlu0 %v474, 17
        %v512 = vpop.permute.xlu0 %511
        %513 = vrot.lane.b32.xlu0 %v476, 17
        %v514 = vpop.permute.xlu0 %513
        %515 = vrot.lane.b32.xlu0 %v478, 17
        %v516 = vpop.permute.xlu0 %515
        %517 = vrot.lane.b32.xlu0 %v469, 17
        %v518 = vpop.permute.xlu0 %517
        %519 = vrot.lane.b32.xlu0 %v471, 17
        %v520 = vpop.permute.xlu0 %519
        %521 = vrot.lane.b32.xlu0 %v473, 17
        %v522 = vpop.permute.xlu0 %521
        %523 = vrot.lane.b32.xlu0 %v475, 17
        %v524 = vpop.permute.xlu0 %523
        %525 = vrot.lane.b32.xlu0 %v477, 17
        %v526 = vpop.permute.xlu0 %525
        %527 = vrot.lane.b32.xlu0 %v479, 17
        %v528 = vpop.permute.xlu0 %527
        %v529 = vlaneseq
        %v530 = vand.u32 %v529, 127
        %vm531 = vcmp.lt.s32.totalorder %v530, 17
        %v532 = vsel %vm531, %v506, %v518
        %v533 = vsel %vm531, %v508, %v520
        %v534 = vsel %vm531, %v510, %v522
        %v535 = vsel %vm531, %v512, %v524
        %v536 = vsel %vm531, %v514, %v526
        %v537 = vsel %vm531, %v516, %v528
        %v538 = vsel %vm531, %v518, %v506
        %v539 = vsel %vm531, %v520, %v508
        %v540 = vsel %vm531, %v522, %v510
        %v541 = vsel %vm531, %v524, %v512
        %v542 = vsel %vm531, %v526, %v514
        %v543 = vsel %vm531, %v528, %v516
        %v544 = vld [vmem:[#allocation2] sm:$0xff]
        %v545 = vld [vmem:[#allocation2 + $0x8] sm:$0xff]
        %v546 = vld [vmem:[#allocation2 + $0x10] sm:$0xff]
        %v547 = vld [vmem:[#allocation2 + $0x18] sm:$0xff]
        %v548 = vld [vmem:[#allocation2 + $0x20] sm:$0xff]
        %v549 = vld [vmem:[#allocation2 + $0x28] sm:$0xff]
        %v550 = vld [vmem:[#allocation2 + $0x30] sm:$0xff]
        %v551 = vld [vmem:[#allocation2 + $0x38] sm:$0xff]
        %v552 = vld [vmem:[#allocation2 + $0x40] sm:$0xff]
        %v553 = vld [vmem:[#allocation2 + $0x48] sm:$0xff]
        %v554 = vld [vmem:[#allocation2 + $0x50] sm:$0xff]
        %v555 = vld [vmem:[#allocation2 + $0x58] sm:$0xff]
        %v556 = vmul.f32 %v538, %v544
        %v557 = vmul.f32 %v532, %v545
        %v558 = vmul.f32 %v539, %v546
        %v559 = vmul.f32 %v533, %v547
        %v560 = vmul.f32 %v540, %v548
        %v561 = vmul.f32 %v534, %v549
        %v562 = vmul.f32 %v541, %v550
        %v563 = vmul.f32 %v535, %v551
        %v564 = vmul.f32 %v542, %v552
        %v565 = vmul.f32 %v536, %v553
        %v566 = vmul.f32 %v543, %v554
        %v567 = vmul.f32 %v537, %v555
        %v568 = vadd.f32 %v493, %v556
        %v569 = vadd.f32 %v494, %v557
        %v570 = vadd.f32 %v495, %v558
        %v571 = vadd.f32 %v496, %v559
        %v572 = vadd.f32 %v497, %v560
        %v573 = vadd.f32 %v498, %v561
        %v574 = vadd.f32 %v499, %v562
        %v575 = vadd.f32 %v500, %v563
        %v576 = vadd.f32 %v501, %v564
        %v577 = vadd.f32 %v502, %v565
        %v578 = vadd.f32 %v503, %v566
        %v579 = vadd.f32 %v504, %v567
        %580 = vrot.lane.b32.xlu0 %v468, 16
        %v581 = vpop.permute.xlu0 %580
        %582 = vrot.lane.b32.xlu0 %v470, 16
        %v583 = vpop.permute.xlu0 %582
        %584 = vrot.lane.b32.xlu0 %v472, 16
        %v585 = vpop.permute.xlu0 %584
        %586 = vrot.lane.b32.xlu0 %v474, 16
        %v587 = vpop.permute.xlu0 %586
        %588 = vrot.lane.b32.xlu0 %v476, 16
        %v589 = vpop.permute.xlu0 %588
        %590 = vrot.lane.b32.xlu0 %v478, 16
        %v591 = vpop.permute.xlu0 %590
        %592 = vrot.lane.b32.xlu0 %v469, 16
        %v593 = vpop.permute.xlu0 %592
        %594 = vrot.lane.b32.xlu0 %v471, 16
        %v595 = vpop.permute.xlu0 %594
        %596 = vrot.lane.b32.xlu0 %v473, 16
        %v597 = vpop.permute.xlu0 %596
        %598 = vrot.lane.b32.xlu0 %v475, 16
        %v599 = vpop.permute.xlu0 %598
        %600 = vrot.lane.b32.xlu0 %v477, 16
        %v601 = vpop.permute.xlu0 %600
        %602 = vrot.lane.b32.xlu0 %v479, 16
        %v603 = vpop.permute.xlu0 %602
        %vm604 = vcmp.lt.s32.totalorder %v530, 16
        %v605 = vsel %vm604, %v581, %v593
        %v606 = vsel %vm604, %v583, %v595
        %v607 = vsel %vm604, %v585, %v597
        %v608 = vsel %vm604, %v587, %v599
        %v609 = vsel %vm604, %v589, %v601
        %v610 = vsel %vm604, %v591, %v603
        %v611 = vsel %vm604, %v593, %v581
        %v612 = vsel %vm604, %v595, %v583
        %v613 = vsel %vm604, %v597, %v585
        %v614 = vsel %vm604, %v599, %v587
        %v615 = vsel %vm604, %v601, %v589
        %v616 = vsel %vm604, %v603, %v591
        %s617 = scalar_lea.vmem [#allocation2], 96
        %v618 = vld [vmem:[%s617] sm:$0xff]
        %v619 = vld [vmem:[%s617 + $0x8] sm:$0xff]
        %v620 = vld [vmem:[%s617 + $0x10] sm:$0xff]
        %v621 = vld [vmem:[%s617 + $0x18] sm:$0xff]
        %v622 = vld [vmem:[%s617 + $0x20] sm:$0xff]
        %v623 = vld [vmem:[%s617 + $0x28] sm:$0xff]
        %v624 = vld [vmem:[%s617 + $0x30] sm:$0xff]
        %v625 = vld [vmem:[%s617 + $0x38] sm:$0xff]
        %v626 = vld [vmem:[%s617 + $0x40] sm:$0xff]
        %v627 = vld [vmem:[%s617 + $0x48] sm:$0xff]
        %v628 = vld [vmem:[%s617 + $0x50] sm:$0xff]
        %v629 = vld [vmem:[%s617 + $0x58] sm:$0xff]
        %v630 = vmul.f32 %v611, %v618
        %v631 = vmul.f32 %v605, %v619
        %v632 = vmul.f32 %v612, %v620
        %v633 = vmul.f32 %v606, %v621
        %v634 = vmul.f32 %v613, %v622
        %v635 = vmul.f32 %v607, %v623
        %v636 = vmul.f32 %v614, %v624
        %v637 = vmul.f32 %v608, %v625
        %v638 = vmul.f32 %v615, %v626
        %v639 = vmul.f32 %v609, %v627
        %v640 = vmul.f32 %v616, %v628
        %v641 = vmul.f32 %v610, %v629
        %v642 = vadd.f32 %v568, %v630
        %v643 = vadd.f32 %v569, %v631
        %v644 = vadd.f32 %v570, %v632
        %v645 = vadd.f32 %v571, %v633
        %v646 = vadd.f32 %v572, %v634
        %v647 = vadd.f32 %v573, %v635
        %v648 = vadd.f32 %v574, %v636
        %v649 = vadd.f32 %v575, %v637
        %v650 = vadd.f32 %v576, %v638
        %v651 = vadd.f32 %v577, %v639
        %v652 = vadd.f32 %v578, %v640
        %v653 = vadd.f32 %v579, %v641
        %654 = vrot.lane.b32.xlu0 %v468, 15
        %v655 = vpop.permute.xlu0 %654
        %656 = vrot.lane.b32.xlu0 %v470, 15
        %v657 = vpop.permute.xlu0 %656
        %658 = vrot.lane.b32.xlu0 %v472, 15
        %v659 = vpop.permute.xlu0 %658
        %660 = vrot.lane.b32.xlu0 %v474, 15
        %v661 = vpop.permute.xlu0 %660
        %662 = vrot.lane.b32.xlu0 %v476, 15
        %v663 = vpop.permute.xlu0 %662
        %664 = vrot.lane.b32.xlu0 %v478, 15
        %v665 = vpop.permute.xlu0 %664
        %666 = vrot.lane.b32.xlu0 %v469, 15
        %v667 = vpop.permute.xlu0 %666
        %668 = vrot.lane.b32.xlu0 %v471, 15
        %v669 = vpop.permute.xlu0 %668
        %670 = vrot.lane.b32.xlu0 %v473, 15
        %v671 = vpop.permute.xlu0 %670
        %672 = vrot.lane.b32.xlu0 %v475, 15
        %v673 = vpop.permute.xlu0 %672
        %674 = vrot.lane.b32.xlu0 %v477, 15
        %v675 = vpop.permute.xlu0 %674
        %676 = vrot.lane.b32.xlu0 %v479, 15
        %v677 = vpop.permute.xlu0 %676
        %vm678 = vcmp.lt.s32.totalorder %v530, 15
        %v679 = vsel %vm678, %v655, %v667
        %v680 = vsel %vm678, %v657, %v669
        %v681 = vsel %vm678, %v659, %v671
        %v682 = vsel %vm678, %v661, %v673
        %v683 = vsel %vm678, %v663, %v675
        %v684 = vsel %vm678, %v665, %v677
        %v685 = vsel %vm678, %v667, %v655
        %v686 = vsel %vm678, %v669, %v657
        %v687 = vsel %vm678, %v671, %v659
        %v688 = vsel %vm678, %v673, %v661
        %v689 = vsel %vm678, %v675, %v663
        %v690 = vsel %vm678, %v677, %v665
        %s691 = scalar_lea.vmem [#allocation2], 192
        %v692 = vld [vmem:[%s691] sm:$0xff]
        %v693 = vld [vmem:[%s691 + $0x8] sm:$0xff]
        %v694 = vld [vmem:[%s691 + $0x10] sm:$0xff]
        %v695 = vld [vmem:[%s691 + $0x18] sm:$0xff]
        %v696 = vld [vmem:[%s691 + $0x20] sm:$0xff]
        %v697 = vld [vmem:[%s691 + $0x28] sm:$0xff]
        %v698 = vld [vmem:[%s691 + $0x30] sm:$0xff]
        %v699 = vld [vmem:[%s691 + $0x38] sm:$0xff]
        %v700 = vld [vmem:[%s691 + $0x40] sm:$0xff]
        %v701 = vld [vmem:[%s691 + $0x48] sm:$0xff]
        %v702 = vld [vmem:[%s691 + $0x50] sm:$0xff]
        %v703 = vld [vmem:[%s691 + $0x58] sm:$0xff]
        %v704 = vmul.f32 %v685, %v692
        %v705 = vmul.f32 %v679, %v693
        %v706 = vmul.f32 %v686, %v694
        %v707 = vmul.f32 %v680, %v695
        %v708 = vmul.f32 %v687, %v696
        %v709 = vmul.f32 %v681, %v697
        %v710 = vmul.f32 %v688, %v698
        %v711 = vmul.f32 %v682, %v699
        %v712 = vmul.f32 %v689, %v700
        %v713 = vmul.f32 %v683, %v701
        %v714 = vmul.f32 %v690, %v702
        %v715 = vmul.f32 %v684, %v703
        %v716 = vadd.f32 %v642, %v704
        %v717 = vadd.f32 %v643, %v705
        %v718 = vadd.f32 %v644, %v706
        %v719 = vadd.f32 %v645, %v707
        %v720 = vadd.f32 %v646, %v708
        %v721 = vadd.f32 %v647, %v709
        %v722 = vadd.f32 %v648, %v710
        %v723 = vadd.f32 %v649, %v711
        %v724 = vadd.f32 %v650, %v712
        %v725 = vadd.f32 %v651, %v713
        %v726 = vadd.f32 %v652, %v714
        %v727 = vadd.f32 %v653, %v715
        %728 = vrot.lane.b32.xlu0 %v468, 1
        %v729 = vpop.permute.xlu0 %728
        %730 = vrot.lane.b32.xlu0 %v470, 1
        %v731 = vpop.permute.xlu0 %730
        %732 = vrot.lane.b32.xlu0 %v472, 1
        %v733 = vpop.permute.xlu0 %732
        %734 = vrot.lane.b32.xlu0 %v474, 1
        %v735 = vpop.permute.xlu0 %734
        %736 = vrot.lane.b32.xlu0 %v476, 1
        %v737 = vpop.permute.xlu0 %736
        %738 = vrot.lane.b32.xlu0 %v478, 1
        %v739 = vpop.permute.xlu0 %738
        %740 = vrot.lane.b32.xlu0 %v469, 1
        %v741 = vpop.permute.xlu0 %740
        %742 = vrot.lane.b32.xlu0 %v471, 1
        %v743 = vpop.permute.xlu0 %742
        %744 = vrot.lane.b32.xlu0 %v473, 1
        %v745 = vpop.permute.xlu0 %744
        %746 = vrot.lane.b32.xlu0 %v475, 1
        %v747 = vpop.permute.xlu0 %746
        %748 = vrot.lane.b32.xlu0 %v477, 1
        %v749 = vpop.permute.xlu0 %748
        %750 = vrot.lane.b32.xlu0 %v479, 1
        %v751 = vpop.permute.xlu0 %750
        %vm752 = vcmp.lt.s32.totalorder %v530, 1
        %v753 = vsel %vm752, %v729, %v741
        %v754 = vsel %vm752, %v731, %v743
        %v755 = vsel %vm752, %v733, %v745
        %v756 = vsel %vm752, %v735, %v747
        %v757 = vsel %vm752, %v737, %v749
        %v758 = vsel %vm752, %v739, %v751
        %v759 = vsel %vm752, %v741, %v729
        %v760 = vsel %vm752, %v743, %v731
        %v761 = vsel %vm752, %v745, %v733
        %v762 = vsel %vm752, %v747, %v735
        %v763 = vsel %vm752, %v749, %v737
        %v764 = vsel %vm752, %v751, %v739
        %s765 = scalar_lea.vmem [#allocation2], 288
        %v766 = vld [vmem:[%s765] sm:$0xff]
        %v767 = vld [vmem:[%s765 + $0x8] sm:$0xff]
        %v768 = vld [vmem:[%s765 + $0x10] sm:$0xff]
        %v769 = vld [vmem:[%s765 + $0x18] sm:$0xff]
        %v770 = vld [vmem:[%s765 + $0x20] sm:$0xff]
        %v771 = vld [vmem:[%s765 + $0x28] sm:$0xff]
        %v772 = vld [vmem:[%s765 + $0x30] sm:$0xff]
        %v773 = vld [vmem:[%s765 + $0x38] sm:$0xff]
        %v774 = vld [vmem:[%s765 + $0x40] sm:$0xff]
        %v775 = vld [vmem:[%s765 + $0x48] sm:$0xff]
        %v776 = vld [vmem:[%s765 + $0x50] sm:$0xff]
        %v777 = vld [vmem:[%s765 + $0x58] sm:$0xff]
        %v778 = vmul.f32 %v759, %v766
        %v779 = vmul.f32 %v753, %v767
        %v780 = vmul.f32 %v760, %v768
        %v781 = vmul.f32 %v754, %v769
        %v782 = vmul.f32 %v761, %v770
        %v783 = vmul.f32 %v755, %v771
        %v784 = vmul.f32 %v762, %v772
        %v785 = vmul.f32 %v756, %v773
        %v786 = vmul.f32 %v763, %v774
        %v787 = vmul.f32 %v757, %v775
        %v788 = vmul.f32 %v764, %v776
        %v789 = vmul.f32 %v758, %v777
        %v790 = vadd.f32 %v716, %v778
        %v791 = vadd.f32 %v717, %v779
        %v792 = vadd.f32 %v718, %v780
        %v793 = vadd.f32 %v719, %v781
        %v794 = vadd.f32 %v720, %v782
        %v795 = vadd.f32 %v721, %v783
        %v796 = vadd.f32 %v722, %v784
        %v797 = vadd.f32 %v723, %v785
        %v798 = vadd.f32 %v724, %v786
        %v799 = vadd.f32 %v725, %v787
        %v800 = vadd.f32 %v726, %v788
        %v801 = vadd.f32 %v727, %v789
        %802 = vrot.lane.b32.xlu0 %v468, 127
        %v803 = vpop.permute.xlu0 %802
        %804 = vrot.lane.b32.xlu0 %v470, 127
        %v805 = vpop.permute.xlu0 %804
        %806 = vrot.lane.b32.xlu0 %v472, 127
        %v807 = vpop.permute.xlu0 %806
        %808 = vrot.lane.b32.xlu0 %v474, 127
        %v809 = vpop.permute.xlu0 %808
        %810 = vrot.lane.b32.xlu0 %v476, 127
        %v811 = vpop.permute.xlu0 %810
        %812 = vrot.lane.b32.xlu0 %v478, 127
        %v813 = vpop.permute.xlu0 %812
        %814 = vrot.lane.b32.xlu0 %v469, 127
        %v815 = vpop.permute.xlu0 %814
        %816 = vrot.lane.b32.xlu0 %v471, 127
        %v817 = vpop.permute.xlu0 %816
        %818 = vrot.lane.b32.xlu0 %v473, 127
        %v819 = vpop.permute.xlu0 %818
        %820 = vrot.lane.b32.xlu0 %v475, 127
        %v821 = vpop.permute.xlu0 %820
        %822 = vrot.lane.b32.xlu0 %v477, 127
        %v823 = vpop.permute.xlu0 %822
        %824 = vrot.lane.b32.xlu0 %v479, 127
        %v825 = vpop.permute.xlu0 %824
        %vm826 = vcmp.lt.s32.totalorder %v530, 127
        %v827 = vsel %vm826, %v803, %v815
        %v828 = vsel %vm826, %v805, %v817
        %v829 = vsel %vm826, %v807, %v819
        %v830 = vsel %vm826, %v809, %v821
        %v831 = vsel %vm826, %v811, %v823
        %v832 = vsel %vm826, %v813, %v825
        %v833 = vsel %vm826, %v815, %v803
        %v834 = vsel %vm826, %v817, %v805
        %v835 = vsel %vm826, %v819, %v807
        %v836 = vsel %vm826, %v821, %v809
        %v837 = vsel %vm826, %v823, %v811
        %v838 = vsel %vm826, %v825, %v813
        %s839 = scalar_lea.vmem [#allocation2], 480
        %v840 = vld [vmem:[%s839] sm:$0xff]
        %v841 = vld [vmem:[%s839 + $0x8] sm:$0xff]
        %v842 = vld [vmem:[%s839 + $0x10] sm:$0xff]
        %v843 = vld [vmem:[%s839 + $0x18] sm:$0xff]
        %v844 = vld [vmem:[%s839 + $0x20] sm:$0xff]
        %v845 = vld [vmem:[%s839 + $0x28] sm:$0xff]
        %v846 = vld [vmem:[%s839 + $0x30] sm:$0xff]
        %v847 = vld [vmem:[%s839 + $0x38] sm:$0xff]
        %v848 = vld [vmem:[%s839 + $0x40] sm:$0xff]
        %v849 = vld [vmem:[%s839 + $0x48] sm:$0xff]
        %v850 = vld [vmem:[%s839 + $0x50] sm:$0xff]
        %v851 = vld [vmem:[%s839 + $0x58] sm:$0xff]
        %v852 = vmul.f32 %v827, %v840
        %v853 = vmul.f32 %v833, %v841
        %v854 = vmul.f32 %v828, %v842
        %v855 = vmul.f32 %v834, %v843
        %v856 = vmul.f32 %v829, %v844
        %v857 = vmul.f32 %v835, %v845
        %v858 = vmul.f32 %v830, %v846
        %v859 = vmul.f32 %v836, %v847
        %v860 = vmul.f32 %v831, %v848
        %v861 = vmul.f32 %v837, %v849
        %v862 = vmul.f32 %v832, %v850
        %v863 = vmul.f32 %v838, %v851
        %v864 = vadd.f32 %v790, %v852
        %v865 = vadd.f32 %v791, %v853
        %v866 = vadd.f32 %v792, %v854
        %v867 = vadd.f32 %v793, %v855
        %v868 = vadd.f32 %v794, %v856
        %v869 = vadd.f32 %v795, %v857
        %v870 = vadd.f32 %v796, %v858
        %v871 = vadd.f32 %v797, %v859
        %v872 = vadd.f32 %v798, %v860
        %v873 = vadd.f32 %v799, %v861
        %v874 = vadd.f32 %v800, %v862
        %v875 = vadd.f32 %v801, %v863
        %876 = vrot.lane.b32.xlu0 %v468, 113
        %v877 = vpop.permute.xlu0 %876
        %878 = vrot.lane.b32.xlu0 %v470, 113
        %v879 = vpop.permute.xlu0 %878
        %880 = vrot.lane.b32.xlu0 %v472, 113
        %v881 = vpop.permute.xlu0 %880
        %882 = vrot.lane.b32.xlu0 %v474, 113
        %v883 = vpop.permute.xlu0 %882
        %884 = vrot.lane.b32.xlu0 %v476, 113
        %v885 = vpop.permute.xlu0 %884
        %886 = vrot.lane.b32.xlu0 %v478, 113
        %v887 = vpop.permute.xlu0 %886
        %888 = vrot.lane.b32.xlu0 %v469, 113
        %v889 = vpop.permute.xlu0 %888
        %890 = vrot.lane.b32.xlu0 %v471, 113
        %v891 = vpop.permute.xlu0 %890
        %892 = vrot.lane.b32.xlu0 %v473, 113
        %v893 = vpop.permute.xlu0 %892
        %894 = vrot.lane.b32.xlu0 %v475, 113
        %v895 = vpop.permute.xlu0 %894
        %896 = vrot.lane.b32.xlu0 %v477, 113
        %v897 = vpop.permute.xlu0 %896
        %898 = vrot.lane.b32.xlu0 %v479, 113
        %v899 = vpop.permute.xlu0 %898
        %vm900 = vcmp.lt.s32.totalorder %v530, 113
        %v901 = vsel %vm900, %v877, %v889
        %v902 = vsel %vm900, %v879, %v891
        %v903 = vsel %vm900, %v881, %v893
        %v904 = vsel %vm900, %v883, %v895
        %v905 = vsel %vm900, %v885, %v897
        %v906 = vsel %vm900, %v887, %v899
        %v907 = vsel %vm900, %v889, %v877
        %v908 = vsel %vm900, %v891, %v879
        %v909 = vsel %vm900, %v893, %v881
        %v910 = vsel %vm900, %v895, %v883
        %v911 = vsel %vm900, %v897, %v885
        %v912 = vsel %vm900, %v899, %v887
        %s913 = scalar_lea.vmem [#allocation2], 576
        %v914 = vld [vmem:[%s913] sm:$0xff]
        %v915 = vld [vmem:[%s913 + $0x8] sm:$0xff]
        %v916 = vld [vmem:[%s913 + $0x10] sm:$0xff]
        %v917 = vld [vmem:[%s913 + $0x18] sm:$0xff]
        %v918 = vld [vmem:[%s913 + $0x20] sm:$0xff]
        %v919 = vld [vmem:[%s913 + $0x28] sm:$0xff]
        %v920 = vld [vmem:[%s913 + $0x30] sm:$0xff]
        %v921 = vld [vmem:[%s913 + $0x38] sm:$0xff]
        %v922 = vld [vmem:[%s913 + $0x40] sm:$0xff]
        %v923 = vld [vmem:[%s913 + $0x48] sm:$0xff]
        %v924 = vld [vmem:[%s913 + $0x50] sm:$0xff]
        %v925 = vld [vmem:[%s913 + $0x58] sm:$0xff]
        %v926 = vmul.f32 %v901, %v914
        %v927 = vmul.f32 %v907, %v915
        %v928 = vmul.f32 %v902, %v916
        %v929 = vmul.f32 %v908, %v917
        %v930 = vmul.f32 %v903, %v918
        %v931 = vmul.f32 %v909, %v919
        %v932 = vmul.f32 %v904, %v920
        %v933 = vmul.f32 %v910, %v921
        %v934 = vmul.f32 %v905, %v922
        %v935 = vmul.f32 %v911, %v923
        %v936 = vmul.f32 %v906, %v924
        %v937 = vmul.f32 %v912, %v925
        %v938 = vadd.f32 %v864, %v926
        %v939 = vadd.f32 %v865, %v927
        %v940 = vadd.f32 %v866, %v928
        %v941 = vadd.f32 %v867, %v929
        %v942 = vadd.f32 %v868, %v930
        %v943 = vadd.f32 %v869, %v931
        %v944 = vadd.f32 %v870, %v932
        %v945 = vadd.f32 %v871, %v933
        %v946 = vadd.f32 %v872, %v934
        %v947 = vadd.f32 %v873, %v935
        %v948 = vadd.f32 %v874, %v936
        %v949 = vadd.f32 %v875, %v937
        %950 = vrot.lane.b32.xlu0 %v468, 112
        %v951 = vpop.permute.xlu0 %950
        %952 = vrot.lane.b32.xlu0 %v470, 112
        %v953 = vpop.permute.xlu0 %952
        %954 = vrot.lane.b32.xlu0 %v472, 112
        %v955 = vpop.permute.xlu0 %954
        %956 = vrot.lane.b32.xlu0 %v474, 112
        %v957 = vpop.permute.xlu0 %956
        %958 = vrot.lane.b32.xlu0 %v476, 112
        %v959 = vpop.permute.xlu0 %958
        %960 = vrot.lane.b32.xlu0 %v478, 112
        %v961 = vpop.permute.xlu0 %960
        %962 = vrot.lane.b32.xlu0 %v469, 112
        %v963 = vpop.permute.xlu0 %962
        %964 = vrot.lane.b32.xlu0 %v471, 112
        %v965 = vpop.permute.xlu0 %964
        %966 = vrot.lane.b32.xlu0 %v473, 112
        %v967 = vpop.permute.xlu0 %966
        %968 = vrot.lane.b32.xlu0 %v475, 112
        %v969 = vpop.permute.xlu0 %968
        %970 = vrot.lane.b32.xlu0 %v477, 112
        %v971 = vpop.permute.xlu0 %970
        %972 = vrot.lane.b32.xlu0 %v479, 112
        %v973 = vpop.permute.xlu0 %972
        %vm974 = vcmp.lt.s32.totalorder %v530, 112
        %v975 = vsel %vm974, %v951, %v963
        %v976 = vsel %vm974, %v953, %v965
        %v977 = vsel %vm974, %v955, %v967
        %v978 = vsel %vm974, %v957, %v969
        %v979 = vsel %vm974, %v959, %v971
        %v980 = vsel %vm974, %v961, %v973
        %v981 = vsel %vm974, %v963, %v951
        %v982 = vsel %vm974, %v965, %v953
        %v983 = vsel %vm974, %v967, %v955
        %v984 = vsel %vm974, %v969, %v957
        %v985 = vsel %vm974, %v971, %v959
        %v986 = vsel %vm974, %v973, %v961
        %s987 = scalar_lea.vmem [#allocation2], 672
        %v988 = vld [vmem:[%s987] sm:$0xff]
        %v989 = vld [vmem:[%s987 + $0x8] sm:$0xff]
        %v990 = vld [vmem:[%s987 + $0x10] sm:$0xff]
        %v991 = vld [vmem:[%s987 + $0x18] sm:$0xff]
        %v992 = vld [vmem:[%s987 + $0x20] sm:$0xff]
        %v993 = vld [vmem:[%s987 + $0x28] sm:$0xff]
        %v994 = vld [vmem:[%s987 + $0x30] sm:$0xff]
        %v995 = vld [vmem:[%s987 + $0x38] sm:$0xff]
        %v996 = vld [vmem:[%s987 + $0x40] sm:$0xff]
        %v997 = vld [vmem:[%s987 + $0x48] sm:$0xff]
        %v998 = vld [vmem:[%s987 + $0x50] sm:$0xff]
        %v999 = vld [vmem:[%s987 + $0x58] sm:$0xff]
        %v1000 = vmul.f32 %v975, %v988
        %v1001 = vmul.f32 %v981, %v989
        %v1002 = vmul.f32 %v976, %v990
        %v1003 = vmul.f32 %v982, %v991
        %v1004 = vmul.f32 %v977, %v992
        %v1005 = vmul.f32 %v983, %v993
        %v1006 = vmul.f32 %v978, %v994
        %v1007 = vmul.f32 %v984, %v995
        %v1008 = vmul.f32 %v979, %v996
        %v1009 = vmul.f32 %v985, %v997
        %v1010 = vmul.f32 %v980, %v998
        %v1011 = vmul.f32 %v986, %v999
        %v1012 = vadd.f32 %v938, %v1000
        %v1013 = vadd.f32 %v939, %v1001
        %v1014 = vadd.f32 %v940, %v1002
        %v1015 = vadd.f32 %v941, %v1003
        %v1016 = vadd.f32 %v942, %v1004
        %v1017 = vadd.f32 %v943, %v1005
        %v1018 = vadd.f32 %v944, %v1006
        %v1019 = vadd.f32 %v945, %v1007
        %v1020 = vadd.f32 %v946, %v1008
        %v1021 = vadd.f32 %v947, %v1009
        %v1022 = vadd.f32 %v948, %v1010
        %v1023 = vadd.f32 %v949, %v1011
        %1024 = vrot.lane.b32.xlu0 %v468, 111
        %v1025 = vpop.permute.xlu0 %1024
        %1026 = vrot.lane.b32.xlu0 %v470, 111
        %v1027 = vpop.permute.xlu0 %1026
        %1028 = vrot.lane.b32.xlu0 %v472, 111
        %v1029 = vpop.permute.xlu0 %1028
        %1030 = vrot.lane.b32.xlu0 %v474, 111
        %v1031 = vpop.permute.xlu0 %1030
        %1032 = vrot.lane.b32.xlu0 %v476, 111
        %v1033 = vpop.permute.xlu0 %1032
        %1034 = vrot.lane.b32.xlu0 %v478, 111
        %v1035 = vpop.permute.xlu0 %1034
        %1036 = vrot.lane.b32.xlu0 %v469, 111
        %v1037 = vpop.permute.xlu0 %1036
        %1038 = vrot.lane.b32.xlu0 %v471, 111
        %v1039 = vpop.permute.xlu0 %1038
        %1040 = vrot.lane.b32.xlu0 %v473, 111
        %v1041 = vpop.permute.xlu0 %1040
        %1042 = vrot.lane.b32.xlu0 %v475, 111
        %v1043 = vpop.permute.xlu0 %1042
        %1044 = vrot.lane.b32.xlu0 %v477, 111
        %v1045 = vpop.permute.xlu0 %1044
        %1046 = vrot.lane.b32.xlu0 %v479, 111
        %v1047 = vpop.permute.xlu0 %1046
        %vm1048 = vcmp.lt.s32.totalorder %v530, 111
        %v1049 = vsel %vm1048, %v1025, %v1037
        %v1050 = vsel %vm1048, %v1027, %v1039
        %v1051 = vsel %vm1048, %v1029, %v1041
        %v1052 = vsel %vm1048, %v1031, %v1043
        %v1053 = vsel %vm1048, %v1033, %v1045
        %v1054 = vsel %vm1048, %v1035, %v1047
        %v1055 = vsel %vm1048, %v1037, %v1025
        %v1056 = vsel %vm1048, %v1039, %v1027
        %v1057 = vsel %vm1048, %v1041, %v1029
        %v1058 = vsel %vm1048, %v1043, %v1031
        %v1059 = vsel %vm1048, %v1045, %v1033
        %v1060 = vsel %vm1048, %v1047, %v1035
        %s1061 = scalar_lea.vmem [#allocation2], 768
        %v1062 = vld [vmem:[%s1061] sm:$0xff]
        %v1063 = vld [vmem:[%s1061 + $0x8] sm:$0xff]
        %v1064 = vld [vmem:[%s1061 + $0x10] sm:$0xff]
        %v1065 = vld [vmem:[%s1061 + $0x18] sm:$0xff]
        %v1066 = vld [vmem:[%s1061 + $0x20] sm:$0xff]
        %v1067 = vld [vmem:[%s1061 + $0x28] sm:$0xff]
        %v1068 = vld [vmem:[%s1061 + $0x30] sm:$0xff]
        %v1069 = vld [vmem:[%s1061 + $0x38] sm:$0xff]
        %v1070 = vld [vmem:[%s1061 + $0x40] sm:$0xff]
        %v1071 = vld [vmem:[%s1061 + $0x48] sm:$0xff]
        %v1072 = vld [vmem:[%s1061 + $0x50] sm:$0xff]
        %v1073 = vld [vmem:[%s1061 + $0x58] sm:$0xff]
        %v1074 = vmul.f32 %v1049, %v1062
        %v1075 = vmul.f32 %v1055, %v1063
        %v1076 = vmul.f32 %v1050, %v1064
        %v1077 = vmul.f32 %v1056, %v1065
        %v1078 = vmul.f32 %v1051, %v1066
        %v1079 = vmul.f32 %v1057, %v1067
        %v1080 = vmul.f32 %v1052, %v1068
        %v1081 = vmul.f32 %v1058, %v1069
        %v1082 = vmul.f32 %v1053, %v1070
        %v1083 = vmul.f32 %v1059, %v1071
        %v1084 = vmul.f32 %v1054, %v1072
        %v1085 = vmul.f32 %v1060, %v1073
        %v1086 = vadd.f32 %v1012, %v1074
        %v1087 = vadd.f32 %v1013, %v1075
        %v1088 = vadd.f32 %v1014, %v1076
        %v1089 = vadd.f32 %v1015, %v1077
        %v1090 = vadd.f32 %v1016, %v1078
        %v1091 = vadd.f32 %v1017, %v1079
        %v1092 = vadd.f32 %v1018, %v1080
        %v1093 = vadd.f32 %v1019, %v1081
        %v1094 = vadd.f32 %v1020, %v1082
        %v1095 = vadd.f32 %v1021, %v1083
        %v1096 = vadd.f32 %v1022, %v1084
        %v1097 = vadd.f32 %v1023, %v1085
        %v1098 = vld [vmem:[%s4] sm:$0xff]
        %v1099 = vld [vmem:[%s4 + $0x8] sm:$0xff]
        %v1100 = vld [vmem:[%s4 + $0x10] sm:$0xff]
        %v1101 = vld [vmem:[%s4 + $0x18] sm:$0xff]
        %v1102 = vld [vmem:[%s4 + $0x20] sm:$0xff]
        %v1103 = vld [vmem:[%s4 + $0x28] sm:$0xff]
        %1105 = vset.pattern.permute.xlu0 0
        %1106 = vperm.xlu0 %1105, %v1098
        %v1107 = vpop.permute.xlu0 %1106
        %1110 = vset.pattern.permute.xlu0 0
        %1111 = vperm.xlu0 %1110, %v1099
        %v1112 = vpop.permute.xlu0 %1111
        %1115 = vset.pattern.permute.xlu0 0
        %1116 = vperm.xlu0 %1115, %v1100
        %v1117 = vpop.permute.xlu0 %1116
        %1120 = vset.pattern.permute.xlu0 0
        %1121 = vperm.xlu0 %1120, %v1101
        %v1122 = vpop.permute.xlu0 %1121
        %1125 = vset.pattern.permute.xlu0 0
        %1126 = vperm.xlu0 %1125, %v1102
        %v1127 = vpop.permute.xlu0 %1126
        %1130 = vset.pattern.permute.xlu0 0
        %1131 = vperm.xlu0 %1130, %v1103
        %v1132 = vpop.permute.xlu0 %1131
        %v1134 = vadd.f32 %v1086, %v1107
        %v1135 = vadd.f32 %v1087, %v1107
        %v1136 = vadd.f32 %v1088, %v1112
        %v1137 = vadd.f32 %v1089, %v1112
        %v1138 = vadd.f32 %v1090, %v1117
        %v1139 = vadd.f32 %v1091, %v1117
        %v1140 = vadd.f32 %v1092, %v1122
        %v1141 = vadd.f32 %v1093, %v1122
        %v1142 = vadd.f32 %v1094, %v1127
        %v1143 = vadd.f32 %v1095, %v1127
        %v1144 = vadd.f32 %v1096, %v1132
        %v1145 = vadd.f32 %v1097, %v1132
        %v1146 = vmax.f32 %v1134, 0.0
        %v1147 = vmax.f32 %v1135, 0.0
        %v1148 = vmax.f32 %v1136, 0.0
        %v1149 = vmax.f32 %v1137, 0.0
        %v1150 = vmax.f32 %v1138, 0.0
        %v1151 = vmax.f32 %v1139, 0.0
        %v1152 = vmax.f32 %v1140, 0.0
        %v1153 = vmax.f32 %v1141, 0.0
        %v1154 = vmax.f32 %v1142, 0.0
        %v1155 = vmax.f32 %v1143, 0.0
        %v1156 = vmax.f32 %v1144, 0.0
        %v1157 = vmax.f32 %v1145, 0.0
        %v1158 = vmin.f32 %v1146, 6.0
        %v1159 = vmin.f32 %v1147, 6.0
        %v1160 = vmin.f32 %v1148, 6.0
        %v1161 = vmin.f32 %v1149, 6.0
        %v1162 = vmin.f32 %v1150, 6.0
        %v1163 = vmin.f32 %v1151, 6.0
        %v1164 = vmin.f32 %v1152, 6.0
        %v1165 = vmin.f32 %v1153, 6.0
        %v1166 = vmin.f32 %v1154, 6.0
        %v1167 = vmin.f32 %v1155, 6.0
        %v1168 = vmin.f32 %v1156, 6.0
        %v1169 = vmin.f32 %v1157, 6.0
        %v1170 = vld [vmem:[%s5] sm:$0xff]
        %v1171 = vld [vmem:[%s6] sm:$0xff]
        %1173 = vset.pattern.permute.xlu0 0
        %1174 = vperm.xlu0 %1173, %v1171
        %v1175 = vpop.permute.xlu0 %1174
        %vm1177 = vcmask 392192
        %v1179 = vsel %vm1177, %v1170, 0
        %1181 = vmatprep.subr.mxu0 %v1159
        %1182 = vmatpush1.msra.mxu0 %v1158
        %1183 = vmatprep.subr.mxu0 %v1161
        %1184 = vmatpush1.msra.mxu0 %v1160
        %1185 = vmatprep.subr.mxu0 %v1163
        %1186 = vmatpush1.msra.mxu0 %v1162
        %1187 = vmatprep.subr.mxu0 %v1165
        %1188 = vmatpush1.msra.mxu0 %v1164
        %1189 = vmatprep.subr.mxu0 %v1167
        %1190 = vmatpush1.msra.mxu0 %v1166
        %1191 = vmatprep.subr.mxu0 %v1169
        %1192 = vmatpush1.msra.mxu0 %v1168
        %1193 = vmatprep.subr.mxu0 0.0
        %1194 = vmatpush1.msra.mxu0 0.0
        %1195 = vmatprep.subr.mxu0 0.0
        %1196 = vmatpush1.msra.mxu0 0.0
        %1197 = vmatprep.subr.mxu0 0.0
        %1198 = vmatpush1.msra.mxu0 0.0
        %1199 = vmatprep.subr.mxu0 0.0
        %1200 = vmatpush1.msra.mxu0 0.0
        %1201 = vmatprep.subr.mxu0 0.0
        %1202 = vmatpush1.msra.mxu0 0.0
        %1203 = vmatprep.subr.mxu0 0.0
        %1204 = vmatpush1.msra.mxu0 0.0
        %1205 = vmatprep.subr.mxu0 0.0
        %1206 = vmatpush1.msra.mxu0 0.0
        %1207 = vmatprep.subr.mxu0 0.0
        %1208 = vmatpush1.msra.mxu0 0.0
        %1209 = vmatprep.subr.mxu0 0.0
        %1210 = vmatpush1.msra.mxu0 0.0
        %1211 = vmatprep.subr.mxu0 0.0
        %1212 = vmatpush1.msra.mxu0 0.0
        %1213 = vmatprep.subr.mxu0 0.0
        %1214 = vmatpush1.msra.mxu0 0.0
        %1215 = vmatprep.subr.mxu0 0.0
        %1216 = vmatpush1.msra.mxu0 0.0
        %1217 = vmatprep.subr.mxu0 0.0
        %1218 = vmatpush1.msra.mxu0 0.0
        %1219 = vmatprep.subr.mxu0 0.0
        %1220 = vmatpush1.msra.mxu0 0.0
        %1221 = vmatprep.subr.mxu0 0.0
        %1222 = vmatpush1.msra.mxu0 0.0
        %1223 = vmatprep.subr.mxu0 0.0
        %1224 = vmatpush1.msra.mxu0 0.0
        %1225 = vmatprep.subr.mxu0 0.0
        %1226 = vmatpush1.msra.mxu0 0.0
        %1227 = vmatprep.subr.mxu0 0.0
        %1228 = vmatpush1.msra.mxu0 0.0
        %1229 = vmatprep.subr.mxu0 0.0
        %1230 = vmatpush1.msra.mxu0 0.0
        %1231 = vmatprep.subr.mxu0 0.0
        %1232 = vmatpush1.msra.mxu0 0.0
        %1233 = vmatprep.subr.mxu0 0.0
        %1234 = vmatpush1.msra.mxu0 0.0
        %1235 = vmatprep.subr.mxu0 0.0
        %1236 = vmatpush1.msra.mxu0 0.0
        %1237 = vmatprep.subr.mxu0 0.0
        %1238 = vmatpush1.msra.mxu0 0.0
        %1239 = vmatprep.subr.mxu0 0.0
        %1240 = vmatpush1.msra.mxu0 0.0
        %1241 = vmatprep.subr.mxu0 0.0
        %1242 = vmatpush1.msra.mxu0 0.0
        %1243 = vmatprep.subr.mxu0 0.0
        %1244 = vmatpush1.msra.mxu0 0.0
        %1245 = vmatprep.mubr.f32.mxu0 0.0
        %1246 = vmatmul.mubr.f32.gmra.mrb[0].mxu0 %v1179
        %v1247 = vpop.f32.mrb[0].mxu0
        %v1248 = vadd.f32 %v1175, %v1247
        %v1249 = vpop.f32.mrb[0].mxu0
        %v1250 = vadd.f32 %v1175, %v1249
        %1251 = vdwg.mxu0
        %v1252 = vadd.f32 %v1248, %v292
        %v1253 = vadd.f32 %v1250, %v293
        %1254 = vst [vmem:[%s286] sm:$0xff] %v1252
        %1255 = vst [vmem:[%s286 + $0x8] sm:$0xff] %v1253
        %s1256 = sand.u32 %s182, 1
        %s1257 = scalar_lea.sflag [#allocation4], %s1256
        %s1258 = sand.u32 %s182, 1
        %s1259 = smul.addr %s1258, 16
        %s1260 = scalar_lea.vmem [#allocation5], %s1259
        // Predicated region
        $region53: #{tpu_custom_call.1} parent=47 // pred_check
          %p1261 = pneg %p192
        $region54: #{tpu_custom_call.1} parent=47 // pred_check_branch
          %1263 = sbr.rel (%p1261) target = $region56
        $region55: #{tpu_custom_call.1} parent=47 // pred_region
          %s1265 = ssub.s32 256, 256
          %1266 = vsyncadd %s1257, %s1265
          %s1267 = smul.addr %s22, 2
          %s1268 = smul.addr %s1267, 128
          %s1269 = scalar_lea.hbm %s7, %s1268
          %s1271 = sshll.u32 %s1260, 4
          %s1272 = int_to_ptr.vmem [resolvable:$true] %s1271
          %1274 = dma.vmem_to_hbm [thread:$0]  %s1272, 256, %s1269, %s1257
        $region56: #{tpu_custom_call.1} parent=47 // pred_fallthru
          _
      $region48: #{tpu_custom_call.1} parent=5 // pred_fallthru
        _
      %p1275 = scmp.le.s32.totalorder 2, %s17
      // Predicated region
      $region57: #{tpu_custom_call.1} parent=5 // pred_check
        %p1276 = pneg %p1275
      $region58: #{tpu_custom_call.1} parent=5 // pred_check_branch
        %1278 = sbr.rel (%p1276) target = $region60
      $region59: #{tpu_custom_call.1} parent=5 // pred_region
        %s1279 = ssub.s32 %s17, 2
        // Predicated region
        $region61: #{tpu_custom_call.1} parent=59 // pred_check
          %p1280 = pneg %p198
        $region62: #{tpu_custom_call.1} parent=59 // pred_check_branch
          %1282 = sbr.rel (%p1280) target = $region64
        $region63: #{tpu_custom_call.1} parent=59 // pred_region
          %s1283 = sand.u32 %s183, 1
          %s1284 = scalar_lea.sflag [#allocation4], %s1283
          %s1285 = sand.u32 %s183, 1
          %s1286 = smul.addr %s1285, 16
          %s1287 = scalar_lea.vmem [#allocation5], %s1286
          %1288 = dma.done %s1284, 256
        $region64: #{tpu_custom_call.1} parent=59 // pred_fallthru
          _
      $region60: #{tpu_custom_call.1} parent=5 // pred_fallthru
        _
    $region6: #{tpu_custom_call.1} parent=1 // loop_footer
      %s21 = sadd.s32 1, %s17
    $region7: #{tpu_custom_call.1} parent=1 // loop_footer_branch
      %16 = sbr.rel target = $region3
    $region8: #{tpu_custom_call.1} parent=1 // loop_exit
      _
    %1289 = vsyncpa [#allocation3], 1
    %s1290 = scalar_lea.sflag [#allocation3], 1
    %1291 = vsyncpa %s1290, 1
    %1292 = vsyncpa [#allocation4], 1
    %s1293 = scalar_lea.sflag [#allocation4], 1
    %1294 = vsyncpa %s1293, 1

// kernel: tpu_custom_call.1
$region0: #{tpu_custom_call.1}
  #allocation0 [shape = 'u32[]', space=smem, size = 0x4, offset = 0x4, fixed_abs, tag = 'smem constant byte address 0x4 - core index']
  #allocation1 [shape = 'u32[144,128]{1,0:T(1,128)}', space=vmem, size = 0x12000, scoped, tag = 'internal scratch']
  %s0 = inlined_call_operand.vmem [shape: f32[8,8,256], index: 0, kind: input, shape index: {}]
  %s1 = inlined_call_operand.vmem [shape: f32[48,8], index: 1, kind: input, shape index: {}]
  %s2 = inlined_call_operand.vmem [shape: f32[48,1], index: 2, kind: input, shape index: {}]
  %s3 = inlined_call_operand.hbm [shape: f32[9,48,256], index: 3, kind: input, shape index: {}]
  %s4 = inlined_call_operand.vmem [shape: f32[48,1], index: 4, kind: input, shape index: {}]
  %s5 = inlined_call_operand.vmem [shape: f32[8,48], index: 5, kind: input, shape index: {}]
  %s6 = inlined_call_operand.vmem [shape: f32[8,1], index: 6, kind: input, shape index: {}]
  %s7 = inlined_call_operand.hbm [shape: f32[8,8,256], index: 7, kind: output, shape index: {}]
  %s8 = sld [smem:[#allocation0]]
  $region65: #{tpu_custom_call.1} parent=0
    _
  %s10 = ssub.s32 1, %s8
  %s11 = scalar_select 0, %s10, %s8
  $region1: #{tpu_custom_call.1} parent=0
    #allocation2 [shape = 'u8[442368]{0}', space=vmem, size = 0x6c000, scoped, tag = 'input window, operand 3, single buffered']
    #allocation3 [shape = 's32[2]{0}', space=sflag, size = 0x8, scoped, tag = 'scoped memory for tpu_custom_call.1']
    #allocation4 [shape = 's32[2]{0}', space=sflag, size = 0x8, scoped, tag = 'scoped memory for tpu_custom_call.1']
    #allocation5 [shape = 'u8[16384]{0}', space=vmem, size = 0x4000, scoped, tag = 'output window, operand 0']
    %12 = vsyncpa [#allocation3], 0
    %13 = vsyncpa [#allocation4], 0
    %s14 = scalar_lea.sflag [#allocation4], 1
    %15 = vsyncpa %s14, 0
    loop: start=0, step=1, limit=10
    $region2: #{tpu_custom_call.1} parent=1 // loop_pre_header
      _
    $region3: #{tpu_custom_call.1} parent=1 // loop_header
      %s17 = sphi 0, %s21
      %p18 = scmp.ge.s32.totalorder %s17, 10
      %s27 = sphi 0, %s29
      %s30 = sphi 0, %s27
      %s31 = sphi 0, %s30
      %s47 = sphi 0, %s31
      %s51 = sphi 0, %s51
      %s53 = sphi 0, %s51
      %s54 = sphi 0, %s53
      %s68 = sphi 0, %s54
      %s72 = sphi 0, %s72
      %s74 = sphi 0, %s72
      %s75 = sphi 0, %s74
      %s89 = sphi 0, %s75
      %s93 = sphi 0, %s93
      %s95 = sphi 0, %s93
      %s96 = sphi 0, %s95
      %s110 = sphi 0, %s96
      %s114 = sphi 0, %s114
      %s116 = sphi 0, %s114
      %s117 = sphi 0, %s116
      %s131 = sphi 0, %s117
      %s135 = sphi 0, %s135
      %s137 = sphi 0, %s135
      %s138 = sphi 0, %s137
      %s152 = sphi 0, %s138
      %s156 = sphi 0, %s156
      %s158 = sphi 0, %s156
      %s159 = sphi 0, %s158
      %s173 = sphi 0, %s159
      %s179 = sphi 0, %s181
      %s182 = sphi 0, %s179
      %s183 = sphi 0, %s182
      %s199 = sphi 0, %s183
    $region4: #{tpu_custom_call.1} parent=1 // loop_header_branch
      %20 = sbr.rel (%p18) target = $region8
    $region5: #{tpu_custom_call.1} parent=1 // loop_body
      %s22 = ssub.s32 %s17, 1
      %s23 = ssub.s32 %s17, 2
      %s24 = sadd.s32 %s17, 1
      %s25 = ssub.s32 %s17, %s24
      %p26 = scmp.eq.s32.totalorder %s25, 0
      %s28 = sadd.s32 %s27, 1
      %s29 = scalar_select %p26, %s27, %s28
      %p32 = pneg %p26
      %p33 = scmp.eq.s32.totalorder %s17, 7
      %p34 = por %p32, %p33
      %p35 = scmp.ne.s32.totalorder %s27, %s30
      %p36 = scmp.eq.s32.totalorder %s17, 0
      %p37 = por %p35, %p36
      %p38 = scmp.ne.s32.totalorder %s27, %s30
      %p39 = scmp.eq.s32.totalorder %s22, 7
      %p40 = por %p38, %p39
      %p41 = scmp.ne.s32.totalorder %s30, %s31
      %p42 = scmp.eq.s32.totalorder %s22, 0
      %p43 = por %p41, %p42
      %p44 = scmp.ne.s32.totalorder %s30, %s31
      %p45 = scmp.eq.s32.totalorder %s23, 7
      %p46 = por %p44, %p45
      %p48 = scmp.ne.s32.totalorder %s31, %s47
      %p49 = scmp.eq.s32.totalorder %s23, 0
      %p50 = por %p48, %p49
      %s52 = sadd.s32 %s51, 1
      %p55 = scmp.eq.s32.totalorder %s17, 7
      %p56 = scmp.ne.s32.totalorder %s51, %s53
      %p57 = scmp.eq.s32.totalorder %s17, 0
      %p58 = por %p56, %p57
      %p59 = scmp.ne.s32.totalorder %s51, %s53
      %p60 = scmp.eq.s32.totalorder %s22, 7
      %p61 = por %p59, %p60
      %p62 = scmp.ne.s32.totalorder %s53, %s54
      %p63 = scmp.eq.s32.totalorder %s22, 0
      %p64 = por %p62, %p63
      %p65 = scmp.ne.s32.totalorder %s53, %s54
      %p66 = scmp.eq.s32.totalorder %s23, 7
      %p67 = por %p65, %p66
      %p69 = scmp.ne.s32.totalorder %s54, %s68
      %p70 = scmp.eq.s32.totalorder %s23, 0
      %p71 = por %p69, %p70
      %s73 = sadd.s32 %s72, 1
      %p76 = scmp.eq.s32.totalorder %s17, 7
      %p77 = scmp.ne.s32.totalorder %s72, %s74
      %p78 = scmp.eq.s32.totalorder %s17, 0
      %p79 = por %p77, %p78
      %p80 = scmp.ne.s32.totalorder %s72, %s74
      %p81 = scmp.eq.s32.totalorder %s22, 7
      %p82 = por %p80, %p81
      %p83 = scmp.ne.s32.totalorder %s74, %s75
      %p84 = scmp.eq.s32.totalorder %s22, 0
      %p85 = por %p83, %p84
      %p86 = scmp.ne.s32.totalorder %s74, %s75
      %p87 = scmp.eq.s32.totalorder %s23, 7
      %p88 = por %p86, %p87
      %p90 = scmp.ne.s32.totalorder %s75, %s89
      %p91 = scmp.eq.s32.totalorder %s23, 0
      %p92 = por %p90, %p91
      %s94 = sadd.s32 %s93, 1
      %p97 = scmp.eq.s32.totalorder %s17, 7
      %p98 = scmp.ne.s32.totalorder %s93, %s95
      %p99 = scmp.eq.s32.totalorder %s17, 0
      %p100 = por %p98, %p99
      %p101 = scmp.ne.s32.totalorder %s93, %s95
      %p102 = scmp.eq.s32.totalorder %s22, 7
      %p103 = por %p101, %p102
      %p104 = scmp.ne.s32.totalorder %s95, %s96
      %p105 = scmp.eq.s32.totalorder %s22, 0
      %p106 = por %p104, %p105
      %p107 = scmp.ne.s32.totalorder %s95, %s96
      %p108 = scmp.eq.s32.totalorder %s23, 7
      %p109 = por %p107, %p108
      %p111 = scmp.ne.s32.totalorder %s96, %s110
      %p112 = scmp.eq.s32.totalorder %s23, 0
      %p113 = por %p111, %p112
      %s115 = sadd.s32 %s114, 1
      %p118 = scmp.eq.s32.totalorder %s17, 7
      %p119 = scmp.ne.s32.totalorder %s114, %s116
      %p120 = scmp.eq.s32.totalorder %s17, 0
      %p121 = por %p119, %p120
      %p122 = scmp.ne.s32.totalorder %s114, %s116
      %p123 = scmp.eq.s32.totalorder %s22, 7
      %p124 = por %p122, %p123
      %p125 = scmp.ne.s32.totalorder %s116, %s117
      %p126 = scmp.eq.s32.totalorder %s22, 0
      %p127 = por %p125, %p126
      %p128 = scmp.ne.s32.totalorder %s116, %s117
      %p129 = scmp.eq.s32.totalorder %s23, 7
      %p130 = por %p128, %p129
      %p132 = scmp.ne.s32.totalorder %s117, %s131
      %p133 = scmp.eq.s32.totalorder %s23, 0
      %p134 = por %p132, %p133
      %s136 = sadd.s32 %s135, 1
      %p139 = scmp.eq.s32.totalorder %s17, 7
      %p140 = scmp.ne.s32.totalorder %s135, %s137
      %p141 = scmp.eq.s32.totalorder %s17, 0
      %p142 = por %p140, %p141
      %p143 = scmp.ne.s32.totalorder %s135, %s137
      %p144 = scmp.eq.s32.totalorder %s22, 7
      %p145 = por %p143, %p144
      %p146 = scmp.ne.s32.totalorder %s137, %s138
      %p147 = scmp.eq.s32.totalorder %s22, 0
      %p148 = por %p146, %p147
      %p149 = scmp.ne.s32.totalorder %s137, %s138
      %p150 = scmp.eq.s32.totalorder %s23, 7
      %p151 = por %p149, %p150
      %p153 = scmp.ne.s32.totalorder %s138, %s152
      %p154 = scmp.eq.s32.totalorder %s23, 0
      %p155 = por %p153, %p154
      %s157 = sadd.s32 %s156, 1
      %p160 = scmp.eq.s32.totalorder %s17, 7
      %p161 = scmp.ne.s32.totalorder %s156, %s158
      %p162 = scmp.eq.s32.totalorder %s17, 0
      %p163 = por %p161, %p162
      %p164 = scmp.ne.s32.totalorder %s156, %s158
      %p165 = scmp.eq.s32.totalorder %s22, 7
      %p166 = por %p164, %p165
      %p167 = scmp.ne.s32.totalorder %s158, %s159
      %p168 = scmp.eq.s32.totalorder %s22, 0
      %p169 = por %p167, %p168
      %p170 = scmp.ne.s32.totalorder %s158, %s159
      %p171 = scmp.eq.s32.totalorder %s23, 7
      %p172 = por %p170, %p171
      %p174 = scmp.ne.s32.totalorder %s159, %s173
      %p175 = scmp.eq.s32.totalorder %s23, 0
      %p176 = por %p174, %p175
      %s177 = ssub.s32 %s17, %s24
      %p178 = scmp.eq.s32.totalorder %s177, 0
      %s180 = sadd.s32 %s179, 1
      %s181 = scalar_select %p178, %s179, %s180
      %p184 = pneg %p178
      %p185 = scmp.eq.s32.totalorder %s17, 7
      %p186 = por %p184, %p185
      %p187 = scmp.ne.s32.totalorder %s179, %s182
      %p188 = scmp.eq.s32.totalorder %s17, 0
      %p189 = por %p187, %p188
      %p190 = scmp.ne.s32.totalorder %s179, %s182
      %p191 = scmp.eq.s32.totalorder %s22, 7
      %p192 = por %p190, %p191
      %p193 = scmp.ne.s32.totalorder %s182, %s183
      %p194 = scmp.eq.s32.totalorder %s22, 0
      %p195 = por %p193, %p194
      %p196 = scmp.ne.s32.totalorder %s182, %s183
      %p197 = scmp.eq.s32.totalorder %s23, 7
      %p198 = por %p196, %p197
      %p200 = scmp.ne.s32.totalorder %s183, %s199
      %p201 = scmp.eq.s32.totalorder %s23, 0
      %p202 = por %p200, %p201
      %p203 = scmp.le.s32.totalorder 1, %s17
      %p204 = scmp.lt.s32.totalorder %s17, 9
      %p205 = pnand %p203, %p204
      %p206 = pneg %p205
      // Predicated region
      $region9: #{tpu_custom_call.1} parent=5 // pred_check
        _
      $region10: #{tpu_custom_call.1} parent=5 // pred_check_branch
        %208 = sbr.rel (%p205) target = $region12
      $region11: #{tpu_custom_call.1} parent=5 // pred_region
        %s209 = ssub.s32 %s17, 1
        // Predicated region
        $region13: #{tpu_custom_call.1} parent=11 // pred_check
          %p210 = pneg %p64
        $region14: #{tpu_custom_call.1} parent=11 // pred_check_branch
          %212 = sbr.rel (%p210) target = $region16
        $region15: #{tpu_custom_call.1} parent=11 // pred_region
          _
        $region16: #{tpu_custom_call.1} parent=11 // pred_fallthru
          _
        // Predicated region
        $region17: #{tpu_custom_call.1} parent=11 // pred_check
          %p213 = pneg %p85
        $region18: #{tpu_custom_call.1} parent=11 // pred_check_branch
          %215 = sbr.rel (%p213) target = $region20
        $region19: #{tpu_custom_call.1} parent=11 // pred_region
          _
        $region20: #{tpu_custom_call.1} parent=11 // pred_fallthru
          _
        // Predicated region
        $region21: #{tpu_custom_call.1} parent=11 // pred_check
          %p216 = pneg %p106
        $region22: #{tpu_custom_call.1} parent=11 // pred_check_branch
          %218 = sbr.rel (%p216) target = $region24
        $region23: #{tpu_custom_call.1} parent=11 // pred_region
          %s220 = ssub.s32 13824, 13824
          %221 = vsyncadd [#allocation3], %s220
          %s222 = sshll.u32 [#allocation2], 4
          %s223 = int_to_ptr.vmem [resolvable:$true] %s222
          %228 = dma.hbm_to_vmem [thread:$0]  %s3, 13824, %s223, [#allocation3], 256, 256, 16
        $region24: #{tpu_custom_call.1} parent=11 // pred_fallthru
          _
        // Predicated region
        $region25: #{tpu_custom_call.1} parent=11 // pred_check
          %p229 = pneg %p127
        $region26: #{tpu_custom_call.1} parent=11 // pred_check_branch
          %231 = sbr.rel (%p229) target = $region28
        $region27: #{tpu_custom_call.1} parent=11 // pred_region
          _
        $region28: #{tpu_custom_call.1} parent=11 // pred_fallthru
          _
        // Predicated region
        $region29: #{tpu_custom_call.1} parent=11 // pred_check
          %p232 = pneg %p148
        $region30: #{tpu_custom_call.1} parent=11 // pred_check_branch
          %234 = sbr.rel (%p232) target = $region32
        $region31: #{tpu_custom_call.1} parent=11 // pred_region
          _
        $region32: #{tpu_custom_call.1} parent=11 // pred_fallthru
          _
        // Predicated region
        $region33: #{tpu_custom_call.1} parent=11 // pred_check
          %p235 = pneg %p169
        $region34: #{tpu_custom_call.1} parent=11 // pred_check_branch
          %237 = sbr.rel (%p235) target = $region36
        $region35: #{tpu_custom_call.1} parent=11 // pred_region
          _
        $region36: #{tpu_custom_call.1} parent=11 // pred_fallthru
          _
      $region12: #{tpu_custom_call.1} parent=5 // pred_fallthru
        _
      %p238 = scmp.lt.s32.totalorder %s17, 8
      // Predicated region
      $region37: #{tpu_custom_call.1} parent=5 // pred_check
        %p239 = pneg %p238
      $region38: #{tpu_custom_call.1} parent=5 // pred_check_branch
        %241 = sbr.rel (%p239) target = $region40
      $region39: #{tpu_custom_call.1} parent=5 // pred_region
        // Predicated region
        $region41: #{tpu_custom_call.1} parent=39 // pred_check
          %p242 = pneg %p37
        $region42: #{tpu_custom_call.1} parent=39 // pred_check_branch
          %244 = sbr.rel (%p242) target = $region44
        $region43: #{tpu_custom_call.1} parent=39 // pred_region
          %p245 = scmp.lt.s32.totalorder %s17, 7
          %s246 = scalar_select %p245, %s17, 7
          %s247 = smul.addr %s246, 2
          %s248 = smul.addr %s247, 8
          %s249 = scalar_lea.vmem %s0, %s248
        $region44: #{tpu_custom_call.1} parent=39 // pred_fallthru
          _
      $region40: #{tpu_custom_call.1} parent=5 // pred_fallthru
        _
      %p250 = scmp.le.s32.totalorder 1, %s17
      %p251 = scmp.lt.s32.totalorder %s17, 9
      %p252 = pnand %p250, %p251
      %p253 = pneg %p252
      // Predicated region
      $region45: #{tpu_custom_call.1} parent=5 // pred_check
        _
      $region46: #{tpu_custom_call.1} parent=5 // pred_check_branch
        %255 = sbr.rel (%p252) target = $region48
      $region47: #{tpu_custom_call.1} parent=5 // pred_region
        %s256 = ssub.s32 %s17, 1
        // Predicated region
        $region49: #{tpu_custom_call.1} parent=47 // pred_check
          %p257 = pneg %p106
        $region50: #{tpu_custom_call.1} parent=47 // pred_check_branch
          %259 = sbr.rel (%p257) target = $region52
        $region51: #{tpu_custom_call.1} parent=47 // pred_region
          %260 = dma.done [#allocation3], 13824
        $region52: #{tpu_custom_call.1} parent=47 // pred_fallthru
          _
        %p261 = scmp.lt.s32.totalorder %s22, 7
        %s262 = scalar_select %p261, %s22, 7
        %s263 = smul.addr %s262, 2
        %s264 = smul.addr %s263, 8
        %s265 = scalar_lea.vmem %s0, %s264
        %p266 = pneg %p43
        %p267 = pneg %p40
        %p268 = pneg %p64
        %p269 = pneg %p61
        %p270 = pneg %p85
        %p271 = pneg %p82
        %p272 = pneg %p106
        %p273 = pneg %p103
        %p274 = pneg %p127
        %p275 = pneg %p124
        %p276 = pneg %p148
        %p277 = pneg %p145
        %p278 = pneg %p169
        %p279 = pneg %p166
        %p280 = pneg %p195
        %p281 = pneg %p192
        %s282 = sand.u32 %s182, 1
        %s283 = scalar_lea.sflag [#allocation4], %s282
        %s284 = sand.u32 %s182, 1
        %s285 = smul.addr %s284, 16
        %s286 = scalar_lea.vmem [#allocation5], %s285
        %p287 = scmp.lt.s32.totalorder %s22, 7
        %s288 = scalar_select %p287, %s22, 7
        %s289 = smul.addr %s288, 2
        %s290 = smul.addr %s289, 8
        %s291 = scalar_lea.vmem %s0, %s290
        %v292 = vld [vmem:[%s291] sm:$0xff]
        %v293 = vld [vmem:[%s291 + $0x8] sm:$0xff]
        %v294 = vld [vmem:[%s1] sm:$0xff]
        %v295 = vld [vmem:[%s1 + $0x8] sm:$0xff]
        %v296 = vld [vmem:[%s1 + $0x10] sm:$0xff]
        %v297 = vld [vmem:[%s1 + $0x18] sm:$0xff]
        %v298 = vld [vmem:[%s1 + $0x20] sm:$0xff]
        %v299 = vld [vmem:[%s1 + $0x28] sm:$0xff]
        %v300 = vld [vmem:[%s2] sm:$0xff]
        %v301 = vld [vmem:[%s2 + $0x8] sm:$0xff]
        %v302 = vld [vmem:[%s2 + $0x10] sm:$0xff]
        %v303 = vld [vmem:[%s2 + $0x18] sm:$0xff]
        %v304 = vld [vmem:[%s2 + $0x20] sm:$0xff]
        %v305 = vld [vmem:[%s2 + $0x28] sm:$0xff]
        %307 = vset.pattern.permute.xlu0 0
        %308 = vperm.xlu0 %307, %v300
        %v309 = vpop.permute.xlu0 %308
        %312 = vset.pattern.permute.xlu0 0
        %313 = vperm.xlu0 %312, %v301
        %v314 = vpop.permute.xlu0 %313
        %317 = vset.pattern.permute.xlu0 0
        %318 = vperm.xlu0 %317, %v302
        %v319 = vpop.permute.xlu0 %318
        %322 = vset.pattern.permute.xlu0 0
        %323 = vperm.xlu0 %322, %v303
        %v324 = vpop.permute.xlu0 %323
        %327 = vset.pattern.permute.xlu0 0
        %328 = vperm.xlu0 %327, %v304
        %v329 = vpop.permute.xlu0 %328
        %332 = vset.pattern.permute.xlu0 0
        %333 = vperm.xlu0 %332, %v305
        %v334 = vpop.permute.xlu0 %333
        %vm336 = vcmask 64512
        %v338 = vsel %vm336, %v294, 0
        %v341 = vsel %vm336, %v295, 0
        %v344 = vsel %vm336, %v296, 0
        %v347 = vsel %vm336, %v297, 0
        %v350 = vsel %vm336, %v298, 0
        %v353 = vsel %vm336, %v299, 0
        %355 = vmatprep.subr.mxu0 %v293
        %356 = vmatpush1.msra.mxu0 %v292
        %357 = vmatprep.subr.mxu0 0.0
        %358 = vmatpush1.msra.mxu0 0.0
        %359 = vmatprep.subr.mxu0 0.0
        %360 = vmatpush1.msra.mxu0 0.0
        %361 = vmatprep.subr.mxu0 0.0
        %362 = vmatpush1.msra.mxu0 0.0
        %363 = vmatprep.subr.mxu0 0.0
        %364 = vmatpush1.msra.mxu0 0.0
        %365 = vmatprep.subr.mxu0 0.0
        %366 = vmatpush1.msra.mxu0 0.0
        %367 = vmatprep.subr.mxu0 0.0
        %368 = vmatpush1.msra.mxu0 0.0
        %369 = vmatprep.subr.mxu0 0.0
        %370 = vmatpush1.msra.mxu0 0.0
        %371 = vmatprep.subr.mxu0 0.0
        %372 = vmatpush1.msra.mxu0 0.0
        %373 = vmatprep.subr.mxu0 0.0
        %374 = vmatpush1.msra.mxu0 0.0
        %375 = vmatprep.subr.mxu0 0.0
        %376 = vmatpush1.msra.mxu0 0.0
        %377 = vmatprep.subr.mxu0 0.0
        %378 = vmatpush1.msra.mxu0 0.0
        %379 = vmatprep.subr.mxu0 0.0
        %380 = vmatpush1.msra.mxu0 0.0
        %381 = vmatprep.subr.mxu0 0.0
        %382 = vmatpush1.msra.mxu0 0.0
        %383 = vmatprep.subr.mxu0 0.0
        %384 = vmatpush1.msra.mxu0 0.0
        %385 = vmatprep.subr.mxu0 0.0
        %386 = vmatpush1.msra.mxu0 0.0
        %387 = vmatprep.subr.mxu0 0.0
        %388 = vmatpush1.msra.mxu0 0.0
        %389 = vmatprep.subr.mxu0 0.0
        %390 = vmatpush1.msra.mxu0 0.0
        %391 = vmatprep.subr.mxu0 0.0
        %392 = vmatpush1.msra.mxu0 0.0
        %393 = vmatprep.subr.mxu0 0.0
        %394 = vmatpush1.msra.mxu0 0.0
        %395 = vmatprep.subr.mxu0 0.0
        %396 = vmatpush1.msra.mxu0 0.0
        %397 = vmatprep.subr.mxu0 0.0
        %398 = vmatpush1.msra.mxu0 0.0
        %399 = vmatprep.subr.mxu0 0.0
        %400 = vmatpush1.msra.mxu0 0.0
        %401 = vmatprep.subr.mxu0 0.0
        %402 = vmatpush1.msra.mxu0 0.0
        %403 = vmatprep.subr.mxu0 0.0
        %404 = vmatpush1.msra.mxu0 0.0
        %405 = vmatprep.subr.mxu0 0.0
        %406 = vmatpush1.msra.mxu0 0.0
        %407 = vmatprep.subr.mxu0 0.0
        %408 = vmatpush1.msra.mxu0 0.0
        %409 = vmatprep.subr.mxu0 0.0
        %410 = vmatpush1.msra.mxu0 0.0
        %411 = vmatprep.subr.mxu0 0.0
        %412 = vmatpush1.msra.mxu0 0.0
        %413 = vmatprep.subr.mxu0 0.0
        %414 = vmatpush1.msra.mxu0 0.0
        %415 = vmatprep.subr.mxu0 0.0
        %416 = vmatpush1.msra.mxu0 0.0
        %417 = vmatprep.subr.mxu0 0.0
        %418 = vmatpush1.msra.mxu0 0.0
        %419 = vmatprep.mubr.f32.mxu0 0.0
        %420 = vmatmul.mubr.f32.gmra.mrb[0].mxu0 %v338
        %v421 = vpop.f32.mrb[0].mxu0
        %v422 = vadd.f32 %v309, %v421
        %v423 = vpop.f32.mrb[0].mxu0
        %v424 = vadd.f32 %v309, %v423
        %425 = vmatprep.mubr.f32.mxu0 0.0
        %426 = vmatmul.mubr.f32.gmra.mrb[0].mxu0 %v341
        %v427 = vpop.f32.mrb[0].mxu0
        %v428 = vadd.f32 %v314, %v427
        %v429 = vpop.f32.mrb[0].mxu0
        %v430 = vadd.f32 %v314, %v429
        %431 = vmatprep.mubr.f32.mxu0 0.0
        %432 = vmatmul.mubr.f32.gmra.mrb[0].mxu0 %v344
        %v433 = vpop.f32.mrb[0].mxu0
        %v434 = vadd.f32 %v319, %v433
        %v435 = vpop.f32.mrb[0].mxu0
        %v436 = vadd.f32 %v319, %v435
        %437 = vmatprep.mubr.f32.mxu0 0.0
        %438 = vmatmul.mubr.f32.gmra.mrb[0].mxu0 %v347
        %v439 = vpop.f32.mrb[0].mxu0
        %v440 = vadd.f32 %v324, %v439
        %v441 = vpop.f32.mrb[0].mxu0
        %v442 = vadd.f32 %v324, %v441
        %443 = vmatprep.mubr.f32.mxu0 0.0
        %444 = vmatmul.mubr.f32.gmra.mrb[0].mxu0 %v350
        %v445 = vpop.f32.mrb[0].mxu0
        %v446 = vadd.f32 %v329, %v445
        %v447 = vpop.f32.mrb[0].mxu0
        %v448 = vadd.f32 %v329, %v447
        %449 = vmatprep.mubr.f32.mxu0 0.0
        %450 = vmatmul.mubr.f32.gmra.mrb[0].mxu0 %v353
        %v451 = vpop.f32.mrb[0].mxu0
        %v452 = vadd.f32 %v334, %v451
        %v453 = vpop.f32.mrb[0].mxu0
        %v454 = vadd.f32 %v334, %v453
        %455 = vdwg.mxu0
        %v456 = vmax.f32 %v422, 0.0
        %v457 = vmax.f32 %v424, 0.0
        %v458 = vmax.f32 %v428, 0.0
        %v459 = vmax.f32 %v430, 0.0
        %v460 = vmax.f32 %v434, 0.0
        %v461 = vmax.f32 %v436, 0.0
        %v462 = vmax.f32 %v440, 0.0
        %v463 = vmax.f32 %v442, 0.0
        %v464 = vmax.f32 %v446, 0.0
        %v465 = vmax.f32 %v448, 0.0
        %v466 = vmax.f32 %v452, 0.0
        %v467 = vmax.f32 %v454, 0.0
        %v468 = vmin.f32 %v456, 6.0
        %v469 = vmin.f32 %v457, 6.0
        %v470 = vmin.f32 %v458, 6.0
        %v471 = vmin.f32 %v459, 6.0
        %v472 = vmin.f32 %v460, 6.0
        %v473 = vmin.f32 %v461, 6.0
        %v474 = vmin.f32 %v462, 6.0
        %v475 = vmin.f32 %v463, 6.0
        %v476 = vmin.f32 %v464, 6.0
        %v477 = vmin.f32 %v465, 6.0
        %v478 = vmin.f32 %v466, 6.0
        %v479 = vmin.f32 %v467, 6.0
        %s480 = scalar_lea.vmem [#allocation2], 384
        %v481 = vld [vmem:[%s480] sm:$0xff]
        %v482 = vld [vmem:[%s480 + $0x8] sm:$0xff]
        %v483 = vld [vmem:[%s480 + $0x10] sm:$0xff]
        %v484 = vld [vmem:[%s480 + $0x18] sm:$0xff]
        %v485 = vld [vmem:[%s480 + $0x20] sm:$0xff]
        %v486 = vld [vmem:[%s480 + $0x28] sm:$0xff]
        %v487 = vld [vmem:[%s480 + $0x30] sm:$0xff]
        %v488 = vld [vmem:[%s480 + $0x38] sm:$0xff]
        %v489 = vld [vmem:[%s480 + $0x40] sm:$0xff]
        %v490 = vld [vmem:[%s480 + $0x48] sm:$0xff]
        %v491 = vld [vmem:[%s480 + $0x50] sm:$0xff]
        %v492 = vld [vmem:[%s480 + $0x58] sm:$0xff]
        %v493 = vmul.f32 %v468, %v481
        %v494 = vmul.f32 %v469, %v482
        %v495 = vmul.f32 %v470, %v483
        %v496 = vmul.f32 %v471, %v484
        %v497 = vmul.f32 %v472, %v485
        %v498 = vmul.f32 %v473, %v486
        %v499 = vmul.f32 %v474, %v487
        %v500 = vmul.f32 %v475, %v488
        %v501 = vmul.f32 %v476, %v489
        %v502 = vmul.f32 %v477, %v490
        %v503 = vmul.f32 %v478, %v491
        %v504 = vmul.f32 %v479, %v492
        %505 = vrot.lane.b32.xlu0 %v468, 17
        %v506 = vpop.permute.xlu0 %505
        %507 = vrot.lane.b32.xlu0 %v470, 17
        %v508 = vpop.permute.xlu0 %507
        %509 = vrot.lane.b32.xlu0 %v472, 17
        %v510 = vpop.permute.xlu0 %509
        %511 = vrot.lane.b32.xlu0 %v474, 17
        %v512 = vpop.permute.xlu0 %511
        %513 = vrot.lane.b32.xlu0 %v476, 17
        %v514 = vpop.permute.xlu0 %513
        %515 = vrot.lane.b32.xlu0 %v478, 17
        %v516 = vpop.permute.xlu0 %515
        %517 = vrot.lane.b32.xlu0 %v469, 17
        %v518 = vpop.permute.xlu0 %517
        %519 = vrot.lane.b32.xlu0 %v471, 17
        %v520 = vpop.permute.xlu0 %519
        %521 = vrot.lane.b32.xlu0 %v473, 17
        %v522 = vpop.permute.xlu0 %521
        %523 = vrot.lane.b32.xlu0 %v475, 17
        %v524 = vpop.permute.xlu0 %523
        %525 = vrot.lane.b32.xlu0 %v477, 17
        %v526 = vpop.permute.xlu0 %525
        %527 = vrot.lane.b32.xlu0 %v479, 17
        %v528 = vpop.permute.xlu0 %527
        %v529 = vlaneseq
        %v530 = vand.u32 %v529, 127
        %vm531 = vcmp.lt.s32.totalorder %v530, 17
        %v532 = vsel %vm531, %v506, %v518
        %v533 = vsel %vm531, %v508, %v520
        %v534 = vsel %vm531, %v510, %v522
        %v535 = vsel %vm531, %v512, %v524
        %v536 = vsel %vm531, %v514, %v526
        %v537 = vsel %vm531, %v516, %v528
        %v538 = vsel %vm531, %v518, %v506
        %v539 = vsel %vm531, %v520, %v508
        %v540 = vsel %vm531, %v522, %v510
        %v541 = vsel %vm531, %v524, %v512
        %v542 = vsel %vm531, %v526, %v514
        %v543 = vsel %vm531, %v528, %v516
        %v544 = vld [vmem:[#allocation2] sm:$0xff]
        %v545 = vld [vmem:[#allocation2 + $0x8] sm:$0xff]
        %v546 = vld [vmem:[#allocation2 + $0x10] sm:$0xff]
        %v547 = vld [vmem:[#allocation2 + $0x18] sm:$0xff]
        %v548 = vld [vmem:[#allocation2 + $0x20] sm:$0xff]
        %v549 = vld [vmem:[#allocation2 + $0x28] sm:$0xff]
        %v550 = vld [vmem:[#allocation2 + $0x30] sm:$0xff]
        %v551 = vld [vmem:[#allocation2 + $0x38] sm:$0xff]
        %v552 = vld [vmem:[#allocation2 + $0x40] sm:$0xff]
        %v553 = vld [vmem:[#allocation2 + $0x48] sm:$0xff]
        %v554 = vld [vmem:[#allocation2 + $0x50] sm:$0xff]
        %v555 = vld [vmem:[#allocation2 + $0x58] sm:$0xff]
        %v556 = vmul.f32 %v538, %v544
        %v557 = vmul.f32 %v532, %v545
        %v558 = vmul.f32 %v539, %v546
        %v559 = vmul.f32 %v533, %v547
        %v560 = vmul.f32 %v540, %v548
        %v561 = vmul.f32 %v534, %v549
        %v562 = vmul.f32 %v541, %v550
        %v563 = vmul.f32 %v535, %v551
        %v564 = vmul.f32 %v542, %v552
        %v565 = vmul.f32 %v536, %v553
        %v566 = vmul.f32 %v543, %v554
        %v567 = vmul.f32 %v537, %v555
        %v568 = vadd.f32 %v493, %v556
        %v569 = vadd.f32 %v494, %v557
        %v570 = vadd.f32 %v495, %v558
        %v571 = vadd.f32 %v496, %v559
        %v572 = vadd.f32 %v497, %v560
        %v573 = vadd.f32 %v498, %v561
        %v574 = vadd.f32 %v499, %v562
        %v575 = vadd.f32 %v500, %v563
        %v576 = vadd.f32 %v501, %v564
        %v577 = vadd.f32 %v502, %v565
        %v578 = vadd.f32 %v503, %v566
        %v579 = vadd.f32 %v504, %v567
        %580 = vrot.lane.b32.xlu0 %v468, 16
        %v581 = vpop.permute.xlu0 %580
        %582 = vrot.lane.b32.xlu0 %v470, 16
        %v583 = vpop.permute.xlu0 %582
        %584 = vrot.lane.b32.xlu0 %v472, 16
        %v585 = vpop.permute.xlu0 %584
        %586 = vrot.lane.b32.xlu0 %v474, 16
        %v587 = vpop.permute.xlu0 %586
        %588 = vrot.lane.b32.xlu0 %v476, 16
        %v589 = vpop.permute.xlu0 %588
        %590 = vrot.lane.b32.xlu0 %v478, 16
        %v591 = vpop.permute.xlu0 %590
        %592 = vrot.lane.b32.xlu0 %v469, 16
        %v593 = vpop.permute.xlu0 %592
        %594 = vrot.lane.b32.xlu0 %v471, 16
        %v595 = vpop.permute.xlu0 %594
        %596 = vrot.lane.b32.xlu0 %v473, 16
        %v597 = vpop.permute.xlu0 %596
        %598 = vrot.lane.b32.xlu0 %v475, 16
        %v599 = vpop.permute.xlu0 %598
        %600 = vrot.lane.b32.xlu0 %v477, 16
        %v601 = vpop.permute.xlu0 %600
        %602 = vrot.lane.b32.xlu0 %v479, 16
        %v603 = vpop.permute.xlu0 %602
        %vm604 = vcmp.lt.s32.totalorder %v530, 16
        %v605 = vsel %vm604, %v581, %v593
        %v606 = vsel %vm604, %v583, %v595
        %v607 = vsel %vm604, %v585, %v597
        %v608 = vsel %vm604, %v587, %v599
        %v609 = vsel %vm604, %v589, %v601
        %v610 = vsel %vm604, %v591, %v603
        %v611 = vsel %vm604, %v593, %v581
        %v612 = vsel %vm604, %v595, %v583
        %v613 = vsel %vm604, %v597, %v585
        %v614 = vsel %vm604, %v599, %v587
        %v615 = vsel %vm604, %v601, %v589
        %v616 = vsel %vm604, %v603, %v591
        %s617 = scalar_lea.vmem [#allocation2], 96
        %v618 = vld [vmem:[%s617] sm:$0xff]
        %v619 = vld [vmem:[%s617 + $0x8] sm:$0xff]
        %v620 = vld [vmem:[%s617 + $0x10] sm:$0xff]
        %v621 = vld [vmem:[%s617 + $0x18] sm:$0xff]
        %v622 = vld [vmem:[%s617 + $0x20] sm:$0xff]
        %v623 = vld [vmem:[%s617 + $0x28] sm:$0xff]
        %v624 = vld [vmem:[%s617 + $0x30] sm:$0xff]
        %v625 = vld [vmem:[%s617 + $0x38] sm:$0xff]
        %v626 = vld [vmem:[%s617 + $0x40] sm:$0xff]
        %v627 = vld [vmem:[%s617 + $0x48] sm:$0xff]
        %v628 = vld [vmem:[%s617 + $0x50] sm:$0xff]
        %v629 = vld [vmem:[%s617 + $0x58] sm:$0xff]
        %v630 = vmul.f32 %v611, %v618
        %v631 = vmul.f32 %v605, %v619
        %v632 = vmul.f32 %v612, %v620
        %v633 = vmul.f32 %v606, %v621
        %v634 = vmul.f32 %v613, %v622
        %v635 = vmul.f32 %v607, %v623
        %v636 = vmul.f32 %v614, %v624
        %v637 = vmul.f32 %v608, %v625
        %v638 = vmul.f32 %v615, %v626
        %v639 = vmul.f32 %v609, %v627
        %v640 = vmul.f32 %v616, %v628
        %v641 = vmul.f32 %v610, %v629
        %v642 = vadd.f32 %v568, %v630
        %v643 = vadd.f32 %v569, %v631
        %v644 = vadd.f32 %v570, %v632
        %v645 = vadd.f32 %v571, %v633
        %v646 = vadd.f32 %v572, %v634
        %v647 = vadd.f32 %v573, %v635
        %v648 = vadd.f32 %v574, %v636
        %v649 = vadd.f32 %v575, %v637
        %v650 = vadd.f32 %v576, %v638
        %v651 = vadd.f32 %v577, %v639
        %v652 = vadd.f32 %v578, %v640
        %v653 = vadd.f32 %v579, %v641
        %654 = vrot.lane.b32.xlu0 %v468, 15
        %v655 = vpop.permute.xlu0 %654
        %656 = vrot.lane.b32.xlu0 %v470, 15
        %v657 = vpop.permute.xlu0 %656
        %658 = vrot.lane.b32.xlu0 %v472, 15
        %v659 = vpop.permute.xlu0 %658
        %660 = vrot.lane.b32.xlu0 %v474, 15
        %v661 = vpop.permute.xlu0 %660
        %662 = vrot.lane.b32.xlu0 %v476, 15
        %v663 = vpop.permute.xlu0 %662
        %664 = vrot.lane.b32.xlu0 %v478, 15
        %v665 = vpop.permute.xlu0 %664
        %666 = vrot.lane.b32.xlu0 %v469, 15
        %v667 = vpop.permute.xlu0 %666
        %668 = vrot.lane.b32.xlu0 %v471, 15
        %v669 = vpop.permute.xlu0 %668
        %670 = vrot.lane.b32.xlu0 %v473, 15
        %v671 = vpop.permute.xlu0 %670
        %672 = vrot.lane.b32.xlu0 %v475, 15
        %v673 = vpop.permute.xlu0 %672
        %674 = vrot.lane.b32.xlu0 %v477, 15
        %v675 = vpop.permute.xlu0 %674
        %676 = vrot.lane.b32.xlu0 %v479, 15
        %v677 = vpop.permute.xlu0 %676
        %vm678 = vcmp.lt.s32.totalorder %v530, 15
        %v679 = vsel %vm678, %v655, %v667
        %v680 = vsel %vm678, %v657, %v669
        %v681 = vsel %vm678, %v659, %v671
        %v682 = vsel %vm678, %v661, %v673
        %v683 = vsel %vm678, %v663, %v675
        %v684 = vsel %vm678, %v665, %v677
        %v685 = vsel %vm678, %v667, %v655
        %v686 = vsel %vm678, %v669, %v657
        %v687 = vsel %vm678, %v671, %v659
        %v688 = vsel %vm678, %v673, %v661
        %v689 = vsel %vm678, %v675, %v663
        %v690 = vsel %vm678, %v677, %v665
        %s691 = scalar_lea.vmem [#allocation2], 192
        %v692 = vld [vmem:[%s691] sm:$0xff]
        %v693 = vld [vmem:[%s691 + $0x8] sm:$0xff]
        %v694 = vld [vmem:[%s691 + $0x10] sm:$0xff]
        %v695 = vld [vmem:[%s691 + $0x18] sm:$0xff]
        %v696 = vld [vmem:[%s691 + $0x20] sm:$0xff]
        %v697 = vld [vmem:[%s691 + $0x28] sm:$0xff]
        %v698 = vld [vmem:[%s691 + $0x30] sm:$0xff]
        %v699 = vld [vmem:[%s691 + $0x38] sm:$0xff]
        %v700 = vld [vmem:[%s691 + $0x40] sm:$0xff]
        %v701 = vld [vmem:[%s691 + $0x48] sm:$0xff]
        %v702 = vld [vmem:[%s691 + $0x50] sm:$0xff]
        %v703 = vld [vmem:[%s691 + $0x58] sm:$0xff]
        %v704 = vmul.f32 %v685, %v692
        %v705 = vmul.f32 %v679, %v693
        %v706 = vmul.f32 %v686, %v694
        %v707 = vmul.f32 %v680, %v695
        %v708 = vmul.f32 %v687, %v696
        %v709 = vmul.f32 %v681, %v697
        %v710 = vmul.f32 %v688, %v698
        %v711 = vmul.f32 %v682, %v699
        %v712 = vmul.f32 %v689, %v700
        %v713 = vmul.f32 %v683, %v701
        %v714 = vmul.f32 %v690, %v702
        %v715 = vmul.f32 %v684, %v703
        %v716 = vadd.f32 %v642, %v704
        %v717 = vadd.f32 %v643, %v705
        %v718 = vadd.f32 %v644, %v706
        %v719 = vadd.f32 %v645, %v707
        %v720 = vadd.f32 %v646, %v708
        %v721 = vadd.f32 %v647, %v709
        %v722 = vadd.f32 %v648, %v710
        %v723 = vadd.f32 %v649, %v711
        %v724 = vadd.f32 %v650, %v712
        %v725 = vadd.f32 %v651, %v713
        %v726 = vadd.f32 %v652, %v714
        %v727 = vadd.f32 %v653, %v715
        %728 = vrot.lane.b32.xlu0 %v468, 1
        %v729 = vpop.permute.xlu0 %728
        %730 = vrot.lane.b32.xlu0 %v470, 1
        %v731 = vpop.permute.xlu0 %730
        %732 = vrot.lane.b32.xlu0 %v472, 1
        %v733 = vpop.permute.xlu0 %732
        %734 = vrot.lane.b32.xlu0 %v474, 1
        %v735 = vpop.permute.xlu0 %734
        %736 = vrot.lane.b32.xlu0 %v476, 1
        %v737 = vpop.permute.xlu0 %736
        %738 = vrot.lane.b32.xlu0 %v478, 1
        %v739 = vpop.permute.xlu0 %738
        %740 = vrot.lane.b32.xlu0 %v469, 1
        %v741 = vpop.permute.xlu0 %740
        %742 = vrot.lane.b32.xlu0 %v471, 1
        %v743 = vpop.permute.xlu0 %742
        %744 = vrot.lane.b32.xlu0 %v473, 1
        %v745 = vpop.permute.xlu0 %744
        %746 = vrot.lane.b32.xlu0 %v475, 1
        %v747 = vpop.permute.xlu0 %746
        %748 = vrot.lane.b32.xlu0 %v477, 1
        %v749 = vpop.permute.xlu0 %748
        %750 = vrot.lane.b32.xlu0 %v479, 1
        %v751 = vpop.permute.xlu0 %750
        %vm752 = vcmp.lt.s32.totalorder %v530, 1
        %v753 = vsel %vm752, %v729, %v741
        %v754 = vsel %vm752, %v731, %v743
        %v755 = vsel %vm752, %v733, %v745
        %v756 = vsel %vm752, %v735, %v747
        %v757 = vsel %vm752, %v737, %v749
        %v758 = vsel %vm752, %v739, %v751
        %v759 = vsel %vm752, %v741, %v729
        %v760 = vsel %vm752, %v743, %v731
        %v761 = vsel %vm752, %v745, %v733
        %v762 = vsel %vm752, %v747, %v735
        %v763 = vsel %vm752, %v749, %v737
        %v764 = vsel %vm752, %v751, %v739
        %s765 = scalar_lea.vmem [#allocation2], 288
        %v766 = vld [vmem:[%s765] sm:$0xff]
        %v767 = vld [vmem:[%s765 + $0x8] sm:$0xff]
        %v768 = vld [vmem:[%s765 + $0x10] sm:$0xff]
        %v769 = vld [vmem:[%s765 + $0x18] sm:$0xff]
        %v770 = vld [vmem:[%s765 + $0x20] sm:$0xff]
        %v771 = vld [vmem:[%s765 + $0x28] sm:$0xff]
        %v772 = vld [vmem:[%s765 + $0x30] sm:$0xff]
        %v773 = vld [vmem:[%s765 + $0x38] sm:$0xff]
        %v774 = vld [vmem:[%s765 + $0x40] sm:$0xff]
        %v775 = vld [vmem:[%s765 + $0x48] sm:$0xff]
        %v776 = vld [vmem:[%s765 + $0x50] sm:$0xff]
        %v777 = vld [vmem:[%s765 + $0x58] sm:$0xff]
        %v778 = vmul.f32 %v759, %v766
        %v779 = vmul.f32 %v753, %v767
        %v780 = vmul.f32 %v760, %v768
        %v781 = vmul.f32 %v754, %v769
        %v782 = vmul.f32 %v761, %v770
        %v783 = vmul.f32 %v755, %v771
        %v784 = vmul.f32 %v762, %v772
        %v785 = vmul.f32 %v756, %v773
        %v786 = vmul.f32 %v763, %v774
        %v787 = vmul.f32 %v757, %v775
        %v788 = vmul.f32 %v764, %v776
        %v789 = vmul.f32 %v758, %v777
        %v790 = vadd.f32 %v716, %v778
        %v791 = vadd.f32 %v717, %v779
        %v792 = vadd.f32 %v718, %v780
        %v793 = vadd.f32 %v719, %v781
        %v794 = vadd.f32 %v720, %v782
        %v795 = vadd.f32 %v721, %v783
        %v796 = vadd.f32 %v722, %v784
        %v797 = vadd.f32 %v723, %v785
        %v798 = vadd.f32 %v724, %v786
        %v799 = vadd.f32 %v725, %v787
        %v800 = vadd.f32 %v726, %v788
        %v801 = vadd.f32 %v727, %v789
        %802 = vrot.lane.b32.xlu0 %v468, 127
        %v803 = vpop.permute.xlu0 %802
        %804 = vrot.lane.b32.xlu0 %v470, 127
        %v805 = vpop.permute.xlu0 %804
        %806 = vrot.lane.b32.xlu0 %v472, 127
        %v807 = vpop.permute.xlu0 %806
        %808 = vrot.lane.b32.xlu0 %v474, 127
        %v809 = vpop.permute.xlu0 %808
        %810 = vrot.lane.b32.xlu0 %v476, 127
        %v811 = vpop.permute.xlu0 %810
        %812 = vrot.lane.b32.xlu0 %v478, 127
        %v813 = vpop.permute.xlu0 %812
        %814 = vrot.lane.b32.xlu0 %v469, 127
        %v815 = vpop.permute.xlu0 %814
        %816 = vrot.lane.b32.xlu0 %v471, 127
        %v817 = vpop.permute.xlu0 %816
        %818 = vrot.lane.b32.xlu0 %v473, 127
        %v819 = vpop.permute.xlu0 %818
        %820 = vrot.lane.b32.xlu0 %v475, 127
        %v821 = vpop.permute.xlu0 %820
        %822 = vrot.lane.b32.xlu0 %v477, 127
        %v823 = vpop.permute.xlu0 %822
        %824 = vrot.lane.b32.xlu0 %v479, 127
        %v825 = vpop.permute.xlu0 %824
        %vm826 = vcmp.lt.s32.totalorder %v530, 127
        %v827 = vsel %vm826, %v803, %v815
        %v828 = vsel %vm826, %v805, %v817
        %v829 = vsel %vm826, %v807, %v819
        %v830 = vsel %vm826, %v809, %v821
        %v831 = vsel %vm826, %v811, %v823
        %v832 = vsel %vm826, %v813, %v825
        %v833 = vsel %vm826, %v815, %v803
        %v834 = vsel %vm826, %v817, %v805
        %v835 = vsel %vm826, %v819, %v807
        %v836 = vsel %vm826, %v821, %v809
        %v837 = vsel %vm826, %v823, %v811
        %v838 = vsel %vm826, %v825, %v813
        %s839 = scalar_lea.vmem [#allocation2], 480
        %v840 = vld [vmem:[%s839] sm:$0xff]
        %v841 = vld [vmem:[%s839 + $0x8] sm:$0xff]
        %v842 = vld [vmem:[%s839 + $0x10] sm:$0xff]
        %v843 = vld [vmem:[%s839 + $0x18] sm:$0xff]
        %v844 = vld [vmem:[%s839 + $0x20] sm:$0xff]
        %v845 = vld [vmem:[%s839 + $0x28] sm:$0xff]
        %v846 = vld [vmem:[%s839 + $0x30] sm:$0xff]
        %v847 = vld [vmem:[%s839 + $0x38] sm:$0xff]
        %v848 = vld [vmem:[%s839 + $0x40] sm:$0xff]
        %v849 = vld [vmem:[%s839 + $0x48] sm:$0xff]
        %v850 = vld [vmem:[%s839 + $0x50] sm:$0xff]
        %v851 = vld [vmem:[%s839 + $0x58] sm:$0xff]
        %v852 = vmul.f32 %v827, %v840
        %v853 = vmul.f32 %v833, %v841
        %v854 = vmul.f32 %v828, %v842
        %v855 = vmul.f32 %v834, %v843
        %v856 = vmul.f32 %v829, %v844
        %v857 = vmul.f32 %v835, %v845
        %v858 = vmul.f32 %v830, %v846
        %v859 = vmul.f32 %v836, %v847
        %v860 = vmul.f32 %v831, %v848
        %v861 = vmul.f32 %v837, %v849
        %v862 = vmul.f32 %v832, %v850
        %v863 = vmul.f32 %v838, %v851
        %v864 = vadd.f32 %v790, %v852
        %v865 = vadd.f32 %v791, %v853
        %v866 = vadd.f32 %v792, %v854
        %v867 = vadd.f32 %v793, %v855
        %v868 = vadd.f32 %v794, %v856
        %v869 = vadd.f32 %v795, %v857
        %v870 = vadd.f32 %v796, %v858
        %v871 = vadd.f32 %v797, %v859
        %v872 = vadd.f32 %v798, %v860
        %v873 = vadd.f32 %v799, %v861
        %v874 = vadd.f32 %v800, %v862
        %v875 = vadd.f32 %v801, %v863
        %876 = vrot.lane.b32.xlu0 %v468, 113
        %v877 = vpop.permute.xlu0 %876
        %878 = vrot.lane.b32.xlu0 %v470, 113
        %v879 = vpop.permute.xlu0 %878
        %880 = vrot.lane.b32.xlu0 %v472, 113
        %v881 = vpop.permute.xlu0 %880
        %882 = vrot.lane.b32.xlu0 %v474, 113
        %v883 = vpop.permute.xlu0 %882
        %884 = vrot.lane.b32.xlu0 %v476, 113
        %v885 = vpop.permute.xlu0 %884
        %886 = vrot.lane.b32.xlu0 %v478, 113
        %v887 = vpop.permute.xlu0 %886
        %888 = vrot.lane.b32.xlu0 %v469, 113
        %v889 = vpop.permute.xlu0 %888
        %890 = vrot.lane.b32.xlu0 %v471, 113
        %v891 = vpop.permute.xlu0 %890
        %892 = vrot.lane.b32.xlu0 %v473, 113
        %v893 = vpop.permute.xlu0 %892
        %894 = vrot.lane.b32.xlu0 %v475, 113
        %v895 = vpop.permute.xlu0 %894
        %896 = vrot.lane.b32.xlu0 %v477, 113
        %v897 = vpop.permute.xlu0 %896
        %898 = vrot.lane.b32.xlu0 %v479, 113
        %v899 = vpop.permute.xlu0 %898
        %vm900 = vcmp.lt.s32.totalorder %v530, 113
        %v901 = vsel %vm900, %v877, %v889
        %v902 = vsel %vm900, %v879, %v891
        %v903 = vsel %vm900, %v881, %v893
        %v904 = vsel %vm900, %v883, %v895
        %v905 = vsel %vm900, %v885, %v897
        %v906 = vsel %vm900, %v887, %v899
        %v907 = vsel %vm900, %v889, %v877
        %v908 = vsel %vm900, %v891, %v879
        %v909 = vsel %vm900, %v893, %v881
        %v910 = vsel %vm900, %v895, %v883
        %v911 = vsel %vm900, %v897, %v885
        %v912 = vsel %vm900, %v899, %v887
        %s913 = scalar_lea.vmem [#allocation2], 576
        %v914 = vld [vmem:[%s913] sm:$0xff]
        %v915 = vld [vmem:[%s913 + $0x8] sm:$0xff]
        %v916 = vld [vmem:[%s913 + $0x10] sm:$0xff]
        %v917 = vld [vmem:[%s913 + $0x18] sm:$0xff]
        %v918 = vld [vmem:[%s913 + $0x20] sm:$0xff]
        %v919 = vld [vmem:[%s913 + $0x28] sm:$0xff]
        %v920 = vld [vmem:[%s913 + $0x30] sm:$0xff]
        %v921 = vld [vmem:[%s913 + $0x38] sm:$0xff]
        %v922 = vld [vmem:[%s913 + $0x40] sm:$0xff]
        %v923 = vld [vmem:[%s913 + $0x48] sm:$0xff]
        %v924 = vld [vmem:[%s913 + $0x50] sm:$0xff]
        %v925 = vld [vmem:[%s913 + $0x58] sm:$0xff]
        %v926 = vmul.f32 %v901, %v914
        %v927 = vmul.f32 %v907, %v915
        %v928 = vmul.f32 %v902, %v916
        %v929 = vmul.f32 %v908, %v917
        %v930 = vmul.f32 %v903, %v918
        %v931 = vmul.f32 %v909, %v919
        %v932 = vmul.f32 %v904, %v920
        %v933 = vmul.f32 %v910, %v921
        %v934 = vmul.f32 %v905, %v922
        %v935 = vmul.f32 %v911, %v923
        %v936 = vmul.f32 %v906, %v924
        %v937 = vmul.f32 %v912, %v925
        %v938 = vadd.f32 %v864, %v926
        %v939 = vadd.f32 %v865, %v927
        %v940 = vadd.f32 %v866, %v928
        %v941 = vadd.f32 %v867, %v929
        %v942 = vadd.f32 %v868, %v930
        %v943 = vadd.f32 %v869, %v931
        %v944 = vadd.f32 %v870, %v932
        %v945 = vadd.f32 %v871, %v933
        %v946 = vadd.f32 %v872, %v934
        %v947 = vadd.f32 %v873, %v935
        %v948 = vadd.f32 %v874, %v936
        %v949 = vadd.f32 %v875, %v937
        %950 = vrot.lane.b32.xlu0 %v468, 112
        %v951 = vpop.permute.xlu0 %950
        %952 = vrot.lane.b32.xlu0 %v470, 112
        %v953 = vpop.permute.xlu0 %952
        %954 = vrot.lane.b32.xlu0 %v472, 112
        %v955 = vpop.permute.xlu0 %954
        %956 = vrot.lane.b32.xlu0 %v474, 112
        %v957 = vpop.permute.xlu0 %956
        %958 = vrot.lane.b32.xlu0 %v476, 112
        %v959 = vpop.permute.xlu0 %958
        %960 = vrot.lane.b32.xlu0 %v478, 112
        %v961 = vpop.permute.xlu0 %960
        %962 = vrot.lane.b32.xlu0 %v469, 112
        %v963 = vpop.permute.xlu0 %962
        %964 = vrot.lane.b32.xlu0 %v471, 112
        %v965 = vpop.permute.xlu0 %964
        %966 = vrot.lane.b32.xlu0 %v473, 112
        %v967 = vpop.permute.xlu0 %966
        %968 = vrot.lane.b32.xlu0 %v475, 112
        %v969 = vpop.permute.xlu0 %968
        %970 = vrot.lane.b32.xlu0 %v477, 112
        %v971 = vpop.permute.xlu0 %970
        %972 = vrot.lane.b32.xlu0 %v479, 112
        %v973 = vpop.permute.xlu0 %972
        %vm974 = vcmp.lt.s32.totalorder %v530, 112
        %v975 = vsel %vm974, %v951, %v963
        %v976 = vsel %vm974, %v953, %v965
        %v977 = vsel %vm974, %v955, %v967
        %v978 = vsel %vm974, %v957, %v969
        %v979 = vsel %vm974, %v959, %v971
        %v980 = vsel %vm974, %v961, %v973
        %v981 = vsel %vm974, %v963, %v951
        %v982 = vsel %vm974, %v965, %v953
        %v983 = vsel %vm974, %v967, %v955
        %v984 = vsel %vm974, %v969, %v957
        %v985 = vsel %vm974, %v971, %v959
        %v986 = vsel %vm974, %v973, %v961
        %s987 = scalar_lea.vmem [#allocation2], 672
        %v988 = vld [vmem:[%s987] sm:$0xff]
        %v989 = vld [vmem:[%s987 + $0x8] sm:$0xff]
        %v990 = vld [vmem:[%s987 + $0x10] sm:$0xff]
        %v991 = vld [vmem:[%s987 + $0x18] sm:$0xff]
        %v992 = vld [vmem:[%s987 + $0x20] sm:$0xff]
        %v993 = vld [vmem:[%s987 + $0x28] sm:$0xff]
        %v994 = vld [vmem:[%s987 + $0x30] sm:$0xff]
        %v995 = vld [vmem:[%s987 + $0x38] sm:$0xff]
        %v996 = vld [vmem:[%s987 + $0x40] sm:$0xff]
        %v997 = vld [vmem:[%s987 + $0x48] sm:$0xff]
        %v998 = vld [vmem:[%s987 + $0x50] sm:$0xff]
        %v999 = vld [vmem:[%s987 + $0x58] sm:$0xff]
        %v1000 = vmul.f32 %v975, %v988
        %v1001 = vmul.f32 %v981, %v989
        %v1002 = vmul.f32 %v976, %v990
        %v1003 = vmul.f32 %v982, %v991
        %v1004 = vmul.f32 %v977, %v992
        %v1005 = vmul.f32 %v983, %v993
        %v1006 = vmul.f32 %v978, %v994
        %v1007 = vmul.f32 %v984, %v995
        %v1008 = vmul.f32 %v979, %v996
        %v1009 = vmul.f32 %v985, %v997
        %v1010 = vmul.f32 %v980, %v998
        %v1011 = vmul.f32 %v986, %v999
        %v1012 = vadd.f32 %v938, %v1000
        %v1013 = vadd.f32 %v939, %v1001
        %v1014 = vadd.f32 %v940, %v1002
        %v1015 = vadd.f32 %v941, %v1003
        %v1016 = vadd.f32 %v942, %v1004
        %v1017 = vadd.f32 %v943, %v1005
        %v1018 = vadd.f32 %v944, %v1006
        %v1019 = vadd.f32 %v945, %v1007
        %v1020 = vadd.f32 %v946, %v1008
        %v1021 = vadd.f32 %v947, %v1009
        %v1022 = vadd.f32 %v948, %v1010
        %v1023 = vadd.f32 %v949, %v1011
        %1024 = vrot.lane.b32.xlu0 %v468, 111
        %v1025 = vpop.permute.xlu0 %1024
        %1026 = vrot.lane.b32.xlu0 %v470, 111
        %v1027 = vpop.permute.xlu0 %1026
        %1028 = vrot.lane.b32.xlu0 %v472, 111
        %v1029 = vpop.permute.xlu0 %1028
        %1030 = vrot.lane.b32.xlu0 %v474, 111
        %v1031 = vpop.permute.xlu0 %1030
        %1032 = vrot.lane.b32.xlu0 %v476, 111
        %v1033 = vpop.permute.xlu0 %1032
        %1034 = vrot.lane.b32.xlu0 %v478, 111
        %v1035 = vpop.permute.xlu0 %1034
        %1036 = vrot.lane.b32.xlu0 %v469, 111
        %v1037 = vpop.permute.xlu0 %1036
        %1038 = vrot.lane.b32.xlu0 %v471, 111
        %v1039 = vpop.permute.xlu0 %1038
        %1040 = vrot.lane.b32.xlu0 %v473, 111
        %v1041 = vpop.permute.xlu0 %1040
        %1042 = vrot.lane.b32.xlu0 %v475, 111
        %v1043 = vpop.permute.xlu0 %1042
        %1044 = vrot.lane.b32.xlu0 %v477, 111
        %v1045 = vpop.permute.xlu0 %1044
        %1046 = vrot.lane.b32.xlu0 %v479, 111
        %v1047 = vpop.permute.xlu0 %1046
        %vm1048 = vcmp.lt.s32.totalorder %v530, 111
        %v1049 = vsel %vm1048, %v1025, %v1037
        %v1050 = vsel %vm1048, %v1027, %v1039
        %v1051 = vsel %vm1048, %v1029, %v1041
        %v1052 = vsel %vm1048, %v1031, %v1043
        %v1053 = vsel %vm1048, %v1033, %v1045
        %v1054 = vsel %vm1048, %v1035, %v1047
        %v1055 = vsel %vm1048, %v1037, %v1025
        %v1056 = vsel %vm1048, %v1039, %v1027
        %v1057 = vsel %vm1048, %v1041, %v1029
        %v1058 = vsel %vm1048, %v1043, %v1031
        %v1059 = vsel %vm1048, %v1045, %v1033
        %v1060 = vsel %vm1048, %v1047, %v1035
        %s1061 = scalar_lea.vmem [#allocation2], 768
        %v1062 = vld [vmem:[%s1061] sm:$0xff]
        %v1063 = vld [vmem:[%s1061 + $0x8] sm:$0xff]
        %v1064 = vld [vmem:[%s1061 + $0x10] sm:$0xff]
        %v1065 = vld [vmem:[%s1061 + $0x18] sm:$0xff]
        %v1066 = vld [vmem:[%s1061 + $0x20] sm:$0xff]
        %v1067 = vld [vmem:[%s1061 + $0x28] sm:$0xff]
        %v1068 = vld [vmem:[%s1061 + $0x30] sm:$0xff]
        %v1069 = vld [vmem:[%s1061 + $0x38] sm:$0xff]
        %v1070 = vld [vmem:[%s1061 + $0x40] sm:$0xff]
        %v1071 = vld [vmem:[%s1061 + $0x48] sm:$0xff]
        %v1072 = vld [vmem:[%s1061 + $0x50] sm:$0xff]
        %v1073 = vld [vmem:[%s1061 + $0x58] sm:$0xff]
        %v1074 = vmul.f32 %v1049, %v1062
        %v1075 = vmul.f32 %v1055, %v1063
        %v1076 = vmul.f32 %v1050, %v1064
        %v1077 = vmul.f32 %v1056, %v1065
        %v1078 = vmul.f32 %v1051, %v1066
        %v1079 = vmul.f32 %v1057, %v1067
        %v1080 = vmul.f32 %v1052, %v1068
        %v1081 = vmul.f32 %v1058, %v1069
        %v1082 = vmul.f32 %v1053, %v1070
        %v1083 = vmul.f32 %v1059, %v1071
        %v1084 = vmul.f32 %v1054, %v1072
        %v1085 = vmul.f32 %v1060, %v1073
        %v1086 = vadd.f32 %v1012, %v1074
        %v1087 = vadd.f32 %v1013, %v1075
        %v1088 = vadd.f32 %v1014, %v1076
        %v1089 = vadd.f32 %v1015, %v1077
        %v1090 = vadd.f32 %v1016, %v1078
        %v1091 = vadd.f32 %v1017, %v1079
        %v1092 = vadd.f32 %v1018, %v1080
        %v1093 = vadd.f32 %v1019, %v1081
        %v1094 = vadd.f32 %v1020, %v1082
        %v1095 = vadd.f32 %v1021, %v1083
        %v1096 = vadd.f32 %v1022, %v1084
        %v1097 = vadd.f32 %v1023, %v1085
        %v1098 = vld [vmem:[%s4] sm:$0xff]
        %v1099 = vld [vmem:[%s4 + $0x8] sm:$0xff]
        %v1100 = vld [vmem:[%s4 + $0x10] sm:$0xff]
        %v1101 = vld [vmem:[%s4 + $0x18] sm:$0xff]
        %v1102 = vld [vmem:[%s4 + $0x20] sm:$0xff]
        %v1103 = vld [vmem:[%s4 + $0x28] sm:$0xff]
        %1105 = vset.pattern.permute.xlu0 0
        %1106 = vperm.xlu0 %1105, %v1098
        %v1107 = vpop.permute.xlu0 %1106
        %1110 = vset.pattern.permute.xlu0 0
        %1111 = vperm.xlu0 %1110, %v1099
        %v1112 = vpop.permute.xlu0 %1111
        %1115 = vset.pattern.permute.xlu0 0
        %1116 = vperm.xlu0 %1115, %v1100
        %v1117 = vpop.permute.xlu0 %1116
        %1120 = vset.pattern.permute.xlu0 0
        %1121 = vperm.xlu0 %1120, %v1101
        %v1122 = vpop.permute.xlu0 %1121
        %1125 = vset.pattern.permute.xlu0 0
        %1126 = vperm.xlu0 %1125, %v1102
        %v1127 = vpop.permute.xlu0 %1126
        %1130 = vset.pattern.permute.xlu0 0
        %1131 = vperm.xlu0 %1130, %v1103
        %v1132 = vpop.permute.xlu0 %1131
        %v1134 = vadd.f32 %v1086, %v1107
        %v1135 = vadd.f32 %v1087, %v1107
        %v1136 = vadd.f32 %v1088, %v1112
        %v1137 = vadd.f32 %v1089, %v1112
        %v1138 = vadd.f32 %v1090, %v1117
        %v1139 = vadd.f32 %v1091, %v1117
        %v1140 = vadd.f32 %v1092, %v1122
        %v1141 = vadd.f32 %v1093, %v1122
        %v1142 = vadd.f32 %v1094, %v1127
        %v1143 = vadd.f32 %v1095, %v1127
        %v1144 = vadd.f32 %v1096, %v1132
        %v1145 = vadd.f32 %v1097, %v1132
        %v1146 = vmax.f32 %v1134, 0.0
        %v1147 = vmax.f32 %v1135, 0.0
        %v1148 = vmax.f32 %v1136, 0.0
        %v1149 = vmax.f32 %v1137, 0.0
        %v1150 = vmax.f32 %v1138, 0.0
        %v1151 = vmax.f32 %v1139, 0.0
        %v1152 = vmax.f32 %v1140, 0.0
        %v1153 = vmax.f32 %v1141, 0.0
        %v1154 = vmax.f32 %v1142, 0.0
        %v1155 = vmax.f32 %v1143, 0.0
        %v1156 = vmax.f32 %v1144, 0.0
        %v1157 = vmax.f32 %v1145, 0.0
        %v1158 = vmin.f32 %v1146, 6.0
        %v1159 = vmin.f32 %v1147, 6.0
        %v1160 = vmin.f32 %v1148, 6.0
        %v1161 = vmin.f32 %v1149, 6.0
        %v1162 = vmin.f32 %v1150, 6.0
        %v1163 = vmin.f32 %v1151, 6.0
        %v1164 = vmin.f32 %v1152, 6.0
        %v1165 = vmin.f32 %v1153, 6.0
        %v1166 = vmin.f32 %v1154, 6.0
        %v1167 = vmin.f32 %v1155, 6.0
        %v1168 = vmin.f32 %v1156, 6.0
        %v1169 = vmin.f32 %v1157, 6.0
        %v1170 = vld [vmem:[%s5] sm:$0xff]
        %v1171 = vld [vmem:[%s6] sm:$0xff]
        %1173 = vset.pattern.permute.xlu0 0
        %1174 = vperm.xlu0 %1173, %v1171
        %v1175 = vpop.permute.xlu0 %1174
        %vm1177 = vcmask 392192
        %v1179 = vsel %vm1177, %v1170, 0
        %1181 = vmatprep.subr.mxu0 %v1159
        %1182 = vmatpush1.msra.mxu0 %v1158
        %1183 = vmatprep.subr.mxu0 %v1161
        %1184 = vmatpush1.msra.mxu0 %v1160
        %1185 = vmatprep.subr.mxu0 %v1163
        %1186 = vmatpush1.msra.mxu0 %v1162
        %1187 = vmatprep.subr.mxu0 %v1165
        %1188 = vmatpush1.msra.mxu0 %v1164
        %1189 = vmatprep.subr.mxu0 %v1167
        %1190 = vmatpush1.msra.mxu0 %v1166
        %1191 = vmatprep.subr.mxu0 %v1169
        %1192 = vmatpush1.msra.mxu0 %v1168
        %1193 = vmatprep.subr.mxu0 0.0
        %1194 = vmatpush1.msra.mxu0 0.0
        %1195 = vmatprep.subr.mxu0 0.0
        %1196 = vmatpush1.msra.mxu0 0.0
        %1197 = vmatprep.subr.mxu0 0.0
        %1198 = vmatpush1.msra.mxu0 0.0
        %1199 = vmatprep.subr.mxu0 0.0
        %1200 = vmatpush1.msra.mxu0 0.0
        %1201 = vmatprep.subr.mxu0 0.0
        %1202 = vmatpush1.msra.mxu0 0.0
        %1203 = vmatprep.subr.mxu0 0.0
        %1204 = vmatpush1.msra.mxu0 0.0
        %1205 = vmatprep.subr.mxu0 0.0
        %1206 = vmatpush1.msra.mxu0 0.0
        %1207 = vmatprep.subr.mxu0 0.0
        %1208 = vmatpush1.msra.mxu0 0.0
        %1209 = vmatprep.subr.mxu0 0.0
        %1210 = vmatpush1.msra.mxu0 0.0
        %1211 = vmatprep.subr.mxu0 0.0
        %1212 = vmatpush1.msra.mxu0 0.0
        %1213 = vmatprep.subr.mxu0 0.0
        %1214 = vmatpush1.msra.mxu0 0.0
        %1215 = vmatprep.subr.mxu0 0.0
        %1216 = vmatpush1.msra.mxu0 0.0
        %1217 = vmatprep.subr.mxu0 0.0
        %1218 = vmatpush1.msra.mxu0 0.0
        %1219 = vmatprep.subr.mxu0 0.0
        %1220 = vmatpush1.msra.mxu0 0.0
        %1221 = vmatprep.subr.mxu0 0.0
        %1222 = vmatpush1.msra.mxu0 0.0
        %1223 = vmatprep.subr.mxu0 0.0
        %1224 = vmatpush1.msra.mxu0 0.0
        %1225 = vmatprep.subr.mxu0 0.0
        %1226 = vmatpush1.msra.mxu0 0.0
        %1227 = vmatprep.subr.mxu0 0.0
        %1228 = vmatpush1.msra.mxu0 0.0
        %1229 = vmatprep.subr.mxu0 0.0
        %1230 = vmatpush1.msra.mxu0 0.0
        %1231 = vmatprep.subr.mxu0 0.0
        %1232 = vmatpush1.msra.mxu0 0.0
        %1233 = vmatprep.subr.mxu0 0.0
        %1234 = vmatpush1.msra.mxu0 0.0
        %1235 = vmatprep.subr.mxu0 0.0
        %1236 = vmatpush1.msra.mxu0 0.0
        %1237 = vmatprep.subr.mxu0 0.0
        %1238 = vmatpush1.msra.mxu0 0.0
        %1239 = vmatprep.subr.mxu0 0.0
        %1240 = vmatpush1.msra.mxu0 0.0
        %1241 = vmatprep.subr.mxu0 0.0
        %1242 = vmatpush1.msra.mxu0 0.0
        %1243 = vmatprep.subr.mxu0 0.0
        %1244 = vmatpush1.msra.mxu0 0.0
        %1245 = vmatprep.mubr.f32.mxu0 0.0
        %1246 = vmatmul.mubr.f32.gmra.mrb[0].mxu0 %v1179
        %v1247 = vpop.f32.mrb[0].mxu0
        %v1248 = vadd.f32 %v1175, %v1247
        %v1249 = vpop.f32.mrb[0].mxu0
        %v1250 = vadd.f32 %v1175, %v1249
        %1251 = vdwg.mxu0
        %v1252 = vadd.f32 %v1248, %v292
        %v1253 = vadd.f32 %v1250, %v293
        %1254 = vst [vmem:[%s286] sm:$0xff] %v1252
        %1255 = vst [vmem:[%s286 + $0x8] sm:$0xff] %v1253
        %s1256 = sand.u32 %s182, 1
        %s1257 = scalar_lea.sflag [#allocation4], %s1256
        %s1258 = sand.u32 %s182, 1
        %s1259 = smul.addr %s1258, 16
        %s1260 = scalar_lea.vmem [#allocation5], %s1259
        // Predicated region
        $region53: #{tpu_custom_call.1} parent=47 // pred_check
          %p1261 = pneg %p192
        $region54: #{tpu_custom_call.1} parent=47 // pred_check_branch
          %1263 = sbr.rel (%p1261) target = $region56
        $region55: #{tpu_custom_call.1} parent=47 // pred_region
          %s1265 = ssub.s32 256, 256
          %1266 = vsyncadd %s1257, %s1265
          %s1267 = smul.addr %s22, 2
          %s1268 = smul.addr %s1267, 128
          %s1269 = scalar_lea.hbm %s7, %s1268
          %s1271 = sshll.u32 %s1260, 4
          %s1272 = int_to_ptr.vmem [resolvable:$true] %s1271
          %1274 = dma.vmem_to_hbm [thread:$0]  %s1272, 256, %s1269, %s1257
        $region56: #{tpu_custom_call.1} parent=47 // pred_fallthru
          _
      $region48: #{tpu_custom_call.1} parent=5 // pred_fallthru
        _
      %p1275 = scmp.le.s32.totalorder 2, %s17
      // Predicated region
      $region57: #{tpu_custom_call.1} parent=5 // pred_check
        %p1276 = pneg %p1275
      $region58: #{tpu_custom_call.1} parent=5 // pred_check_branch
        %1278 = sbr.rel (%p1276) target = $region60
      $region59: #{tpu_custom_call.1} parent=5 // pred_region
        %s1279 = ssub.s32 %s17, 2
        // Predicated region
        $region61: #{tpu_custom_call.1} parent=59 // pred_check
          %p1280 = pneg %p198
        $region62: #{tpu_custom_call.1} parent=59 // pred_check_branch
          %1282 = sbr.rel (%p1280) target = $region64
        $region63: #{tpu_custom_call.1} parent=59 // pred_region
          %s1283 = sand.u32 %s183, 1
          %s1284 = scalar_lea.sflag [#allocation4], %s1283
          %s1285 = sand.u32 %s183, 1
          %s1286 = smul.addr %s1285, 16
          %s1287 = scalar_lea.vmem [#allocation5], %s1286
          %1288 = dma.done %s1284, 256
        $region64: #{tpu_custom_call.1} parent=59 // pred_fallthru
          _
      $region60: #{tpu_custom_call.1} parent=5 // pred_fallthru
        _
    $region6: #{tpu_custom_call.1} parent=1 // loop_footer
      %s21 = sadd.s32 1, %s17
    $region7: #{tpu_custom_call.1} parent=1 // loop_footer_branch
      %16 = sbr.rel target = $region3
    $region8: #{tpu_custom_call.1} parent=1 // loop_exit
      _
    %1289 = vsyncpa [#allocation3], 1
    %s1290 = scalar_lea.sflag [#allocation3], 1
    %1291 = vsyncpa %s1290, 1
    %1292 = vsyncpa [#allocation4], 1
    %s1293 = scalar_lea.sflag [#allocation4], 1
    %1294 = vsyncpa %s1293, 1

</llo_original>
